<compile_context>
chip_gen: v7x
topology: tpu7x:2x2x1
jax: 0.10.0
libtpu: 0.0.40
codegen_flags: <defaults>
</compile_context>

<pallas_src>
import functools

import jax
import jax.numpy as jnp
from jax import lax
from jax.experimental import pallas as pl
from jax.experimental.pallas import tpu as pltpu

LAMBDA_O = 0.013
LAMBDA_2 = 60.0

# bf16 MXU operands with f32 accumulation for the per-batch-tile matmuls.
# Set to False to recover strict f32 (1e-5) agreement with the reference.
USE_BF16_MXU = True


def _round_up(n, m):
    return ((n + m - 1) // m) * m


def _kernelnet_kernel(x_ref,
                      w1_hbm, u1_ref, v1t_ref, b1_ref,
                      w2_hbm, u2_ref, v2t_ref, b2_ref,
                      y_ref, reg_ref,
                      w1eff_ref, w2eff_ref,
                      *, n_input, kernel_hidden):
    # ---- batch-independent work: first grid step only ----------------------
    @pl.when(pl.program_id(0) == 0)
    def _():
        reg_ref[0] = 0.0

        def init_layer(w_hbm, u_ref, vt_ref, w_eff_ref, n_in_valid, n_out_valid):
            # DMA W from HBM into a scoped f32 staging buffer (both layers
            # reuse the same VMEM region), compute the regularizer from it,
            # then write W_eff = W * w_hat into the persistent (bf16) scratch.
            def body(w_f32):
                pltpu.sync_copy(w_hbm, w_f32)
                W = w_f32[...]
                u = u_ref[...]
                v_t = vt_ref[...]
                # gaussian_kernel(u, v) = exp(-||u_i - v_j||^2) via expansion;
                # v is passed pre-transposed so ||v||^2 is a sublane reduce and
                # u.v is a native MXU matmul (no in-kernel transpose).
                uu = jnp.sum(u * u, axis=1, keepdims=True)           # (n_in, 1)
                vv = jnp.sum(v_t * v_t, axis=0, keepdims=True)       # (1, n_out)
                uv = jnp.dot(u, v_t, preferred_element_type=jnp.float32)
                dist2 = jnp.maximum(uu + vv - 2.0 * uv, 0.0)
                w_hat = jnp.exp(-dist2)

                n_in_p, n_out_p = W.shape
                if n_in_p != n_in_valid or n_out_p != n_out_valid:
                    # Zero the zero-padded region so the regularizer matches
                    # the unpadded model (W is already zero there, so W_eff is
                    # unaffected either way).
                    row = lax.broadcasted_iota(jnp.int32, (n_in_p, n_out_p), 0)
                    col = lax.broadcasted_iota(jnp.int32, (n_in_p, n_out_p), 1)
                    w_hat = jnp.where(
                        (row < n_in_valid) & (col < n_out_valid), w_hat, 0.0)

                reg_ref[0] += (LAMBDA_O * 0.5 * jnp.sum(w_hat * w_hat)
                               + LAMBDA_2 * 0.5 * jnp.sum(W * W))
                w_eff_ref[...] = (W * w_hat).astype(w_eff_ref.dtype)

            pl.run_scoped(body, pltpu.VMEM(w_eff_ref.shape, jnp.float32))

        init_layer(w1_hbm, u1_ref, v1t_ref, w1eff_ref, n_input, kernel_hidden)
        init_layer(w2_hbm, u2_ref, v2t_ref, w2eff_ref, kernel_hidden, n_input)

    # ---- per-batch-tile forward ---------------------------------------------
    # sigmoid(z) == 0.5*(tanh(z/2)+1): single EUP push, no f32 divide.
    x = x_ref[...]
    z1 = jnp.dot(x, w1eff_ref[...],
                 preferred_element_type=jnp.float32) + b1_ref[...]
    h = 0.5 * (jnp.tanh(0.5 * z1) + 1.0)
    h = h.astype(w2eff_ref.dtype)
    z2 = jnp.dot(h, w2eff_ref[...],
                 preferred_element_type=jnp.float32) + b2_ref[...]
    y_ref[...] = (0.5 * (jnp.tanh(0.5 * z2) + 1.0)).astype(y_ref.dtype)


def kernelnet_autoencoder(x, params, *, use_bf16_mxu=USE_BF16_MXU):
    """Whole forward (encoder + decoder + regularizer) in one pallas_call."""
    batch, n_input = x.shape
    kernel_hidden = params["W1"].shape[1]
    d = params["u1"].shape[1]
    f32 = jnp.float32
    cdt = jnp.bfloat16 if use_bf16_mxu else f32
    cdt_bytes = 2 if use_bf16_mxu else 4

    # Lane-dense feature padding (zero pad).  Padded W entries are zero, so
    # the padded region never contributes to y; w_hat is masked in-kernel for
    # the regularizer.
    n_in_p = _round_up(n_input, 128)
    kh_p = _round_up(kernel_hidden, 128)

    # 256-wide batch tiles feed the 2x256^2 MXU of v6e/v7x; 128 for medium
    # batches; padded batch for tiny ones.
    if batch >= 256:
        tile_b = 256
    elif batch >= 128:
        tile_b = 128
    else:
        tile_b = _round_up(batch, 8)
    batch_p = _round_up(batch, tile_b)

    def pad2(a, rows, cols, dtype=f32):
        a = a.astype(f32)
        a = jnp.pad(a, ((0, rows - a.shape[0]), (0, cols - a.shape[1])))
        return a.astype(dtype)

    x_p = pad2(x, batch_p, n_in_p, cdt)
    w1_p = pad2(params["W1"], n_in_p, kh_p)
    u1_p = pad2(params["u1"], n_in_p, d)
    v1t_p = pad2(params["v1"], kh_p, d).T            # (d, kh_p)
    b1_p = pad2(params["b1"], 1, kh_p)
    w2_p = pad2(params["W2"], kh_p, n_in_p)
    u2_p = pad2(params["u2"], kh_p, d)
    v2t_p = pad2(params["v2"], n_in_p, d).T          # (d, n_in_p)
    b2_p = pad2(params["b2"], 1, n_in_p)

    grid = (batch_p // tile_b,)

    def resident(shape):
        # Constant index map -> stays in VMEM across batch tiles.  Only the
        # small u / v^T / b arrays use this (W1/W2 go HBM -> scratch), so the
        # default double-buffering costs a few KiB at most.
        return pl.BlockSpec(shape, lambda i: (0, 0))

    # VMEM budget: small resident arrays (x2 double-buffer), W_eff scratch,
    # scoped f32 staging (peak = max over the two layers), double-buffered
    # x / y batch tiles, plus headroom.
    small_resident = 2 * 4 * (u1_p.size + v1t_p.size + b1_p.size
                              + u2_p.size + v2t_p.size + b2_p.size)
    w_eff_bytes = (w1_p.size + w2_p.size) * cdt_bytes
    staging_bytes = 4 * max(w1_p.size, w2_p.size)
    io_bytes = 2 * tile_b * n_in_p * (cdt_bytes + 4)
    vmem_needed = small_resident + w_eff_bytes + staging_bytes + io_bytes
    vmem_limit = int(vmem_needed * 1.25) + (4 << 20)
    vmem_limit = max(vmem_limit, 32 << 20)
    vmem_limit = min(vmem_limit, 96 << 20)

    flops = (2 * batch_p * n_in_p * kh_p             # encoder matmul
             + 2 * batch_p * kh_p * n_in_p           # decoder matmul
             + 2 * n_in_p * d * kh_p                 # u1 . v1
             + 2 * kh_p * d * n_in_p)                # u2 . v2
    transcendentals = 2 * n_in_p * kh_p + batch_p * (n_in_p + kh_p)
    bytes_accessed = (x_p.size * cdt_bytes
                      + 4 * (w1_p.size + w2_p.size + u1_p.size + u2_p.size
                             + v1t_p.size + v2t_p.size + b1_p.size + b2_p.size)
                      + 4 * (batch_p * n_in_p + 1))

    kernel = functools.partial(_kernelnet_kernel,
                               n_input=n_input, kernel_hidden=kernel_hidden)

    y_p, reg = pl.pallas_call(
        kernel,
        out_shape=(
            jax.ShapeDtypeStruct((batch_p, n_in_p), f32),
            jax.ShapeDtypeStruct((1,), f32),
        ),
        grid=grid,
        in_specs=[
            pl.BlockSpec((tile_b, n_in_p), lambda i: (i, 0)),   # x batch tile
            pl.BlockSpec(memory_space=pl.ANY),                  # W1 (HBM)
            resident((n_in_p, d)),                              # u1
            resident((d, kh_p)),                                # v1^T
            resident((1, kh_p)),                                # b1
            pl.BlockSpec(memory_space=pl.ANY),                  # W2 (HBM)
            resident((kh_p, d)),                                # u2
            resident((d, n_in_p)),                              # v2^T
            resident((1, n_in_p)),                              # b2
        ],
        out_specs=(
            pl.BlockSpec((tile_b, n_in_p), lambda i: (i, 0)),
            pl.BlockSpec(memory_space=pltpu.MemorySpace.SMEM),  # scalar reg
        ),
        scratch_shapes=[
            pltpu.VMEM((n_in_p, kh_p), cdt),                    # W1_eff
            pltpu.VMEM((kh_p, n_in_p), cdt),                    # W2_eff
        ],
        compiler_params=pltpu.CompilerParams(
            # "arbitrary": sequential grid so W_eff scratch is built once on
            # step 0 and reused, and reg is written exactly once.
            # TODO(synk): v7x megacore -> "parallel" + per-core init flag.
            dimension_semantics=("arbitrary",),
            vmem_limit_bytes=vmem_limit,
        ),
        cost_estimate=pl.CostEstimate(flops=flops,
                                      transcendentals=transcendentals,
                                      bytes_accessed=bytes_accessed),
    )(x_p, w1_p, u1_p, v1t_p, b1_p, w2_p, u2_p, v2t_p, b2_p)

    return y_p[:batch, :n_input], reg[0]


def init_params(key, n_input, kernel_hidden, hidden_dims):
    """Deterministic synthetic parameters matching the module's shapes."""
    ks = jax.random.split(key, 8)
    f32 = jnp.float32
    return {
        # Encoder: n_input -> kernel_hidden
        "W1": jax.random.normal(ks[0], (n_input, kernel_hidden), f32) / jnp.sqrt(n_input),
        "u1": jax.random.normal(ks[1], (n_input, hidden_dims), f32) * 1e-3,
        "v1": jax.random.normal(ks[2], (kernel_hidden, hidden_dims), f32) * 1e-3,
        "b1": jnp.zeros((1, kernel_hidden), f32),
        # Decoder: kernel_hidden -> n_input
        "W2": jax.random.normal(ks[3], (kernel_hidden, n_input), f32) / jnp.sqrt(kernel_hidden),
        "u2": jax.random.normal(ks[4], (kernel_hidden, hidden_dims), f32) * 1e-3,
        "v2": jax.random.normal(ks[5], (n_input, hidden_dims), f32) * 1e-3,
        "b2": jnp.zeros((1, n_input), f32),
    }


def reference_forward(x, p):
    """Pure-JAX reference of the PyTorch forward for validation."""
    def layer(x, W, u, v, b):
        diff = u[:, None, :] - v[None, :, :]
        w_hat = jnp.exp(-jnp.sum(diff * diff, axis=-1))
        y = jax.nn.sigmoid(x @ (W * w_hat) + b)
        reg = LAMBDA_O * 0.5 * jnp.sum(w_hat ** 2) + LAMBDA_2 * 0.5 * jnp.sum(W ** 2)
        return y, reg
    h, r1 = layer(x, p["W1"], p["u1"], p["v1"], p["b1"])
    y, r2 = layer(h, p["W2"], p["u2"], p["v2"], p["b2"])
    return y, r1 + r2


if __name__ == "__main__":
    batch, n_input, kernel_hidden, hidden_dims = 8, 32, 64, 5

    key = jax.random.PRNGKey(0)
    kx, kp = jax.random.split(key)
    x = jax.random.uniform(kx, (batch, n_input), jnp.float32)
    params = init_params(kp, n_input, kernel_hidden, hidden_dims)

    y, total_reg = kernelnet_autoencoder(x, params)
    jax.block_until_ready((y, total_reg))

    y_exp, reg_exp = reference_forward(x, params)
    assert y.shape == (batch, n_input)
    # bf16 MXU operands (f32 accumulation) -> deliberately relaxed y tolerance.
    # Set USE_BF16_MXU = False for strict 1e-5 agreement.
    if USE_BF16_MXU:
        assert jnp.allclose(y, y_exp, atol=1e-2, rtol=1e-3)
    else:
        assert jnp.allclose(y, y_exp, atol=1e-5, rtol=1e-5)
    # Regularizer is computed entirely in f32 regardless of the MXU flag.
    assert jnp.allclose(total_reg, reg_exp, atol=1e-3, rtol=1e-5)

    print("KERNEL_OK")
</pallas_src>

<mosaic_0001>
module attributes {stable_mosaic.version = 11 : i64} {
  func.func @_kernelnet_kernel(%arg0: i32, %arg1: memref<8x128xbf16, #tpu.memory_space<vmem>>, %arg2: memref<128x128xf32, #tpu.memory_space<any>>, %arg3: memref<128x5xf32, #tpu.memory_space<vmem>>, %arg4: memref<5x128xf32, #tpu.memory_space<vmem>>, %arg5: memref<1x128xf32, #tpu.memory_space<vmem>>, %arg6: memref<128x128xf32, #tpu.memory_space<any>>, %arg7: memref<128x5xf32, #tpu.memory_space<vmem>>, %arg8: memref<5x128xf32, #tpu.memory_space<vmem>>, %arg9: memref<1x128xf32, #tpu.memory_space<vmem>>, %arg10: memref<8x128xf32, #tpu.memory_space<vmem>>, %arg11: memref<1xf32, #tpu.memory_space<smem>>, %arg12: memref<128x128xbf16, #tpu.memory_space<vmem>>, %arg13: memref<128x128xbf16, #tpu.memory_space<vmem>>) attributes {dimension_semantics = [#tpu.dimension_semantics<arbitrary>], iteration_bounds = array<i64: 1>, scalar_prefetch = 0 : i64, scratch_operands = 2 : i64, tpu.core_type = #tpu.core_type<tc>, window_params = [{transform_indices = @transform_0, window_bounds = array<i64: 8, 128>}, {}, {pipeline_mode = #tpu.pipeline_mode<synchronous>, transform_indices = @transform_2, window_bounds = array<i64: 128, 5>}, {pipeline_mode = #tpu.pipeline_mode<synchronous>, transform_indices = @transform_3, window_bounds = array<i64: 5, 128>}, {pipeline_mode = #tpu.pipeline_mode<synchronous>, transform_indices = @transform_4, window_bounds = array<i64: 1, 128>}, {}, {pipeline_mode = #tpu.pipeline_mode<synchronous>, transform_indices = @transform_6, window_bounds = array<i64: 128, 5>}, {pipeline_mode = #tpu.pipeline_mode<synchronous>, transform_indices = @transform_7, window_bounds = array<i64: 5, 128>}, {pipeline_mode = #tpu.pipeline_mode<synchronous>, transform_indices = @transform_8, window_bounds = array<i64: 1, 128>}, {transform_indices = @transform_9, window_bounds = array<i64: 8, 128>}, {transform_indices = @transform_10, window_bounds = array<i64: 1>}]} {
    %c0_i32 = arith.constant 0 : i32
    %0 = arith.cmpi eq, %arg0, %c0_i32 : i32
    %1 = arith.extui %0 : i1 to i32
    %c0_i32_0 = arith.constant 0 : i32
    %2 = arith.cmpi ne, %1, %c0_i32_0 : i32
    scf.if %2 {
      %cst_19 = arith.constant 0.000000e+00 : f32
      %c0_20 = arith.constant 0 : index
      %30 = memref.load %arg11[%c0_20] : memref<1xf32, #tpu.memory_space<smem>>
      memref.store %cst_19, %arg11[%c0_20] : memref<1xf32, #tpu.memory_space<smem>>
      "tpu.region"() ({
        %alloca = memref.alloca() : memref<128x128xf32, #tpu.memory_space<vmem>>
        "tpu.region"() ({
          %80 = tpu.sem_alloc : memref<!tpu.dma_semaphore, #tpu.memory_space<semaphore_mem>>
          tpu.enqueue_dma source(%arg2 : memref<128x128xf32, #tpu.memory_space<any>>) target(%alloca : memref<128x128xf32, #tpu.memory_space<vmem>>) target_semaphore(%80 : memref<!tpu.dma_semaphore, #tpu.memory_space<semaphore_mem>>)
          tpu.wait_dma2 semaphore(%80 : memref<!tpu.dma_semaphore, #tpu.memory_space<semaphore_mem>>) src(%arg2 : memref<128x128xf32, #tpu.memory_space<any>>) dst(%alloca : memref<128x128xf32, #tpu.memory_space<vmem>>)
          tpu.yield
        }) : () -> ()
        %c0_21 = arith.constant 0 : index
        %c0_22 = arith.constant 0 : index
        %31 = vector.load %alloca[%c0_21, %c0_22] : memref<128x128xf32, #tpu.memory_space<vmem>>, vector<128x128xf32>
        %c0_23 = arith.constant 0 : index
        %c0_24 = arith.constant 0 : index
        %32 = vector.load %arg3[%c0_23, %c0_24] : memref<128x5xf32, #tpu.memory_space<vmem>>, vector<128x5xf32>
        %c0_25 = arith.constant 0 : index
        %c0_26 = arith.constant 0 : index
        %33 = vector.load %arg4[%c0_25, %c0_26] : memref<5x128xf32, #tpu.memory_space<vmem>>, vector<5x128xf32>
        %34 = arith.mulf %32, %32 : vector<128x5xf32>
        %cst_27 = arith.constant dense<0.000000e+00> : vector<128xf32>
        %35 = vector.multi_reduction <add>, %34, %cst_27 [1] : vector<128x5xf32> to vector<128xf32>
        %36 = vector.shape_cast %35 : vector<128xf32> to vector<128x1xf32>
        %37 = arith.mulf %33, %33 : vector<5x128xf32>
        %cst_28 = arith.constant dense<0.000000e+00> : vector<128xf32>
        %38 = vector.multi_reduction <add>, %37, %cst_28 [0] : vector<5x128xf32> to vector<128xf32>
        %39 = vector.shape_cast %38 : vector<128xf32> to vector<1x128xf32>
        %cst_29 = arith.constant dense<0.000000e+00> : vector<128x128xf32>
        %40 = tpu.matmul %32, %33, %cst_29 {dimension_numbers = #tpu.dot_dimension_numbers<[1], [0], [0], [1], [0, 0, 1, 1], [], []>} : vector<128x5xf32>, vector<5x128xf32>, vector<128x128xf32> -> vector<128x128xf32>
        %41 = vector.broadcast %36 : vector<128x1xf32> to vector<128x128xf32>
        %42 = vector.broadcast %39 : vector<1x128xf32> to vector<128x128xf32>
        %43 = arith.addf %41, %42 : vector<128x128xf32>
        %cst_30 = arith.constant 2.000000e+00 : f32
        %44 = vector.broadcast %cst_30 : f32 to vector<128x128xf32>
        %45 = arith.mulf %44, %40 : vector<128x128xf32>
        %46 = arith.subf %43, %45 : vector<128x128xf32>
        %cst_31 = arith.constant 0.000000e+00 : f32
        %47 = vector.broadcast %cst_31 : f32 to vector<128x128xf32>
        %48 = arith.maximumf %46, %47 : vector<128x128xf32>
        %cst_32 = arith.constant 0.000000e+00 : f32
        %49 = vector.broadcast %cst_32 : f32 to vector<128x128xf32>
        %50 = arith.subf %49, %48 : vector<128x128xf32>
        %51 = math.exp %50 : vector<128x128xf32>
        %52 = tpu.iota {dimensions = array<i32: 0>} : vector<128x128xi32>
        %53 = tpu.iota {dimensions = array<i32: 1>} : vector<128x128xi32>
        %c32_i32 = arith.constant 32 : i32
        %54 = vector.broadcast %c32_i32 : i32 to vector<128x128xi32>
        %55 = arith.cmpi slt, %52, %54 : vector<128x128xi32>
        %c64_i32 = arith.constant 64 : i32
        %56 = vector.broadcast %c64_i32 : i32 to vector<128x128xi32>
        %57 = arith.cmpi slt, %53, %56 : vector<128x128xi32>
        %58 = arith.andi %55, %57 : vector<128x128xi1>
        %cst_33 = arith.constant 0.000000e+00 : f32
        %59 = vector.broadcast %cst_33 : f32 to vector<128x128xf32>
        %60 = arith.select %58, %51, %59 : vector<128x128xi1>, vector<128x128xf32>
        %c0_34 = arith.constant 0 : index
        %61 = memref.load %arg11[%c0_34] : memref<1xf32, #tpu.memory_space<smem>>
        %62 = arith.mulf %60, %60 : vector<128x128xf32>
        %63 = vector.shape_cast %62 : vector<128x128xf32> to vector<1x128x128xf32>
        %cst_35 = arith.constant dense<0.000000e+00> : vector<1xf32>
        %64 = vector.multi_reduction <add>, %63, %cst_35 [1, 2] : vector<1x128x128xf32> to vector<1xf32>
        %65 = vector.shape_cast %64 : vector<1xf32> to vector<1x1x1xf32>
        %66 = vector.extract %65[0, 0, 0] : f32 from vector<1x1x1xf32>
        %cst_36 = arith.constant 6.500000e-03 : f32
        %67 = arith.mulf %cst_36, %66 : f32
        %68 = arith.mulf %31, %31 : vector<128x128xf32>
        %69 = vector.shape_cast %68 : vector<128x128xf32> to vector<1x128x128xf32>
        %cst_37 = arith.constant dense<0.000000e+00> : vector<1xf32>
        %70 = vector.multi_reduction <add>, %69, %cst_37 [1, 2] : vector<1x128x128xf32> to vector<1xf32>
        %71 = vector.shape_cast %70 : vector<1xf32> to vector<1x1x1xf32>
        %72 = vector.extract %71[0, 0, 0] : f32 from vector<1x1x1xf32>
        %cst_38 = arith.constant 3.000000e+01 : f32
        %73 = arith.mulf %cst_38, %72 : f32
        %74 = arith.addf %67, %73 : f32
        %75 = arith.addf %61, %74 : f32
        %c0_39 = arith.constant 0 : index
        %76 = memref.load %arg11[%c0_39] : memref<1xf32, #tpu.memory_space<smem>>
        memref.store %75, %arg11[%c0_39] : memref<1xf32, #tpu.memory_space<smem>>
        %77 = arith.mulf %31, %60 : vector<128x128xf32>
        %78 = arith.truncf %77 : vector<128x128xf32> to vector<128x128xbf16>
        %c0_40 = arith.constant 0 : index
        %c0_41 = arith.constant 0 : index
        %79 = vector.load %arg12[%c0_40, %c0_41] : memref<128x128xbf16, #tpu.memory_space<vmem>>, vector<128x128xbf16>
        tpu.vector_store %arg12[%c0_40, %c0_41], %78 {strides = array<i32>} : memref<128x128xbf16, #tpu.memory_space<vmem>>, vector<128x128xbf16>,
        tpu.yield
      }) : () -> ()
      "tpu.region"() ({
        %alloca = memref.alloca() : memref<128x128xf32, #tpu.memory_space<vmem>>
        "tpu.region"() ({
          %80 = tpu.sem_alloc : memref<!tpu.dma_semaphore, #tpu.memory_space<semaphore_mem>>
          tpu.enqueue_dma source(%arg6 : memref<128x128xf32, #tpu.memory_space<any>>) target(%alloca : memref<128x128xf32, #tpu.memory_space<vmem>>) target_semaphore(%80 : memref<!tpu.dma_semaphore, #tpu.memory_space<semaphore_mem>>)
          tpu.wait_dma2 semaphore(%80 : memref<!tpu.dma_semaphore, #tpu.memory_space<semaphore_mem>>) src(%arg6 : memref<128x128xf32, #tpu.memory_space<any>>) dst(%alloca : memref<128x128xf32, #tpu.memory_space<vmem>>)
          tpu.yield
        }) : () -> ()
        %c0_21 = arith.constant 0 : index
        %c0_22 = arith.constant 0 : index
        %31 = vector.load %alloca[%c0_21, %c0_22] : memref<128x128xf32, #tpu.memory_space<vmem>>, vector<128x128xf32>
        %c0_23 = arith.constant 0 : index
        %c0_24 = arith.constant 0 : index
        %32 = vector.load %arg7[%c0_23, %c0_24] : memref<128x5xf32, #tpu.memory_space<vmem>>, vector<128x5xf32>
        %c0_25 = arith.constant 0 : index
        %c0_26 = arith.constant 0 : index
        %33 = vector.load %arg8[%c0_25, %c0_26] : memref<5x128xf32, #tpu.memory_space<vmem>>, vector<5x128xf32>
        %34 = arith.mulf %32, %32 : vector<128x5xf32>
        %cst_27 = arith.constant dense<0.000000e+00> : vector<128xf32>
        %35 = vector.multi_reduction <add>, %34, %cst_27 [1] : vector<128x5xf32> to vector<128xf32>
        %36 = vector.shape_cast %35 : vector<128xf32> to vector<128x1xf32>
        %37 = arith.mulf %33, %33 : vector<5x128xf32>
        %cst_28 = arith.constant dense<0.000000e+00> : vector<128xf32>
        %38 = vector.multi_reduction <add>, %37, %cst_28 [0] : vector<5x128xf32> to vector<128xf32>
        %39 = vector.shape_cast %38 : vector<128xf32> to vector<1x128xf32>
        %cst_29 = arith.constant dense<0.000000e+00> : vector<128x128xf32>
        %40 = tpu.matmul %32, %33, %cst_29 {dimension_numbers = #tpu.dot_dimension_numbers<[1], [0], [0], [1], [0, 0, 1, 1], [], []>} : vector<128x5xf32>, vector<5x128xf32>, vector<128x128xf32> -> vector<128x128xf32>
        %41 = vector.broadcast %36 : vector<128x1xf32> to vector<128x128xf32>
        %42 = vector.broadcast %39 : vector<1x128xf32> to vector<128x128xf32>
        %43 = arith.addf %41, %42 : vector<128x128xf32>
        %cst_30 = arith.constant 2.000000e+00 : f32
        %44 = vector.broadcast %cst_30 : f32 to vector<128x128xf32>
        %45 = arith.mulf %44, %40 : vector<128x128xf32>
        %46 = arith.subf %43, %45 : vector<128x128xf32>
        %cst_31 = arith.constant 0.000000e+00 : f32
        %47 = vector.broadcast %cst_31 : f32 to vector<128x128xf32>
        %48 = arith.maximumf %46, %47 : vector<128x128xf32>
        %cst_32 = arith.constant 0.000000e+00 : f32
        %49 = vector.broadcast %cst_32 : f32 to vector<128x128xf32>
        %50 = arith.subf %49, %48 : vector<128x128xf32>
        %51 = math.exp %50 : vector<128x128xf32>
        %52 = tpu.iota {dimensions = array<i32: 0>} : vector<128x128xi32>
        %53 = tpu.iota {dimensions = array<i32: 1>} : vector<128x128xi32>
        %c64_i32 = arith.constant 64 : i32
        %54 = vector.broadcast %c64_i32 : i32 to vector<128x128xi32>
        %55 = arith.cmpi slt, %52, %54 : vector<128x128xi32>
        %c32_i32 = arith.constant 32 : i32
        %56 = vector.broadcast %c32_i32 : i32 to vector<128x128xi32>
        %57 = arith.cmpi slt, %53, %56 : vector<128x128xi32>
        %58 = arith.andi %55, %57 : vector<128x128xi1>
        %cst_33 = arith.constant 0.000000e+00 : f32
        %59 = vector.broadcast %cst_33 : f32 to vector<128x128xf32>
        %60 = arith.select %58, %51, %59 : vector<128x128xi1>, vector<128x128xf32>
        %c0_34 = arith.constant 0 : index
        %61 = memref.load %arg11[%c0_34] : memref<1xf32, #tpu.memory_space<smem>>
        %62 = arith.mulf %60, %60 : vector<128x128xf32>
        %63 = vector.shape_cast %62 : vector<128x128xf32> to vector<1x128x128xf32>
        %cst_35 = arith.constant dense<0.000000e+00> : vector<1xf32>
        %64 = vector.multi_reduction <add>, %63, %cst_35 [1, 2] : vector<1x128x128xf32> to vector<1xf32>
        %65 = vector.shape_cast %64 : vector<1xf32> to vector<1x1x1xf32>
        %66 = vector.extract %65[0, 0, 0] : f32 from vector<1x1x1xf32>
        %cst_36 = arith.constant 6.500000e-03 : f32
        %67 = arith.mulf %cst_36, %66 : f32
        %68 = arith.mulf %31, %31 : vector<128x128xf32>
        %69 = vector.shape_cast %68 : vector<128x128xf32> to vector<1x128x128xf32>
        %cst_37 = arith.constant dense<0.000000e+00> : vector<1xf32>
        %70 = vector.multi_reduction <add>, %69, %cst_37 [1, 2] : vector<1x128x128xf32> to vector<1xf32>
        %71 = vector.shape_cast %70 : vector<1xf32> to vector<1x1x1xf32>
        %72 = vector.extract %71[0, 0, 0] : f32 from vector<1x1x1xf32>
        %cst_38 = arith.constant 3.000000e+01 : f32
        %73 = arith.mulf %cst_38, %72 : f32
        %74 = arith.addf %67, %73 : f32
        %75 = arith.addf %61, %74 : f32
        %c0_39 = arith.constant 0 : index
        %76 = memref.load %arg11[%c0_39] : memref<1xf32, #tpu.memory_space<smem>>
        memref.store %75, %arg11[%c0_39] : memref<1xf32, #tpu.memory_space<smem>>
        %77 = arith.mulf %31, %60 : vector<128x128xf32>
        %78 = arith.truncf %77 : vector<128x128xf32> to vector<128x128xbf16>
        %c0_40 = arith.constant 0 : index
        %c0_41 = arith.constant 0 : index
        %79 = vector.load %arg13[%c0_40, %c0_41] : memref<128x128xbf16, #tpu.memory_space<vmem>>, vector<128x128xbf16>
        tpu.vector_store %arg13[%c0_40, %c0_41], %78 {strides = array<i32>} : memref<128x128xbf16, #tpu.memory_space<vmem>>, vector<128x128xbf16>,
        tpu.yield
      }) : () -> ()
    } else {
    }
    %c0 = arith.constant 0 : index
    %c0_1 = arith.constant 0 : index
    %3 = vector.load %arg1[%c0, %c0_1] : memref<8x128xbf16, #tpu.memory_space<vmem>>, vector<8x128xbf16>
    %c0_2 = arith.constant 0 : index
    %c0_3 = arith.constant 0 : index
    %4 = vector.load %arg12[%c0_2, %c0_3] : memref<128x128xbf16, #tpu.memory_space<vmem>>, vector<128x128xbf16>
    %cst = arith.constant dense<0.000000e+00> : vector<8x128xf32>
    %5 = tpu.matmul %3, %4, %cst {dimension_numbers = #tpu.dot_dimension_numbers<[1], [0], [0], [1], [0, 0, 1, 1], [], []>} : vector<8x128xbf16>, vector<128x128xbf16>, vector<8x128xf32> -> vector<8x128xf32>
    %c0_4 = arith.constant 0 : index
    %c0_5 = arith.constant 0 : index
    %6 = vector.load %arg5[%c0_4, %c0_5] : memref<1x128xf32, #tpu.memory_space<vmem>>, vector<1x128xf32>
    %7 = vector.broadcast %6 : vector<1x128xf32> to vector<8x128xf32>
    %8 = arith.addf %5, %7 : vector<8x128xf32>
    %cst_6 = arith.constant 5.000000e-01 : f32
    %9 = vector.broadcast %cst_6 : f32 to vector<8x128xf32>
    %10 = arith.mulf %9, %8 : vector<8x128xf32>
    %11 = math.tanh %10 : vector<8x128xf32>
    %cst_7 = arith.constant 1.000000e+00 : f32
    %12 = vector.broadcast %cst_7 : f32 to vector<8x128xf32>
    %13 = arith.addf %11, %12 : vector<8x128xf32>
    %cst_8 = arith.constant 5.000000e-01 : f32
    %14 = vector.broadcast %cst_8 : f32 to vector<8x128xf32>
    %15 = arith.mulf %14, %13 : vector<8x128xf32>
    %16 = arith.truncf %15 : vector<8x128xf32> to vector<8x128xbf16>
    %c0_9 = arith.constant 0 : index
    %c0_10 = arith.constant 0 : index
    %17 = vector.load %arg13[%c0_9, %c0_10] : memref<128x128xbf16, #tpu.memory_space<vmem>>, vector<128x128xbf16>
    %cst_11 = arith.constant dense<0.000000e+00> : vector<8x128xf32>
    %18 = tpu.matmul %16, %17, %cst_11 {dimension_numbers = #tpu.dot_dimension_numbers<[1], [0], [0], [1], [0, 0, 1, 1], [], []>} : vector<8x128xbf16>, vector<128x128xbf16>, vector<8x128xf32> -> vector<8x128xf32>
    %c0_12 = arith.constant 0 : index
    %c0_13 = arith.constant 0 : index
    %19 = vector.load %arg9[%c0_12, %c0_13] : memref<1x128xf32, #tpu.memory_space<vmem>>, vector<1x128xf32>
    %20 = vector.broadcast %19 : vector<1x128xf32> to vector<8x128xf32>
    %21 = arith.addf %18, %20 : vector<8x128xf32>
    %cst_14 = arith.constant 5.000000e-01 : f32
    %22 = vector.broadcast %cst_14 : f32 to vector<8x128xf32>
    %23 = arith.mulf %22, %21 : vector<8x128xf32>
    %24 = math.tanh %23 : vector<8x128xf32>
    %cst_15 = arith.constant 1.000000e+00 : f32
    %25 = vector.broadcast %cst_15 : f32 to vector<8x128xf32>
    %26 = arith.addf %24, %25 : vector<8x128xf32>
    %cst_16 = arith.constant 5.000000e-01 : f32
    %27 = vector.broadcast %cst_16 : f32 to vector<8x128xf32>
    %28 = arith.mulf %27, %26 : vector<8x128xf32>
    %c0_17 = arith.constant 0 : index
    %c0_18 = arith.constant 0 : index
    %29 = vector.load %arg10[%c0_17, %c0_18] : memref<8x128xf32, #tpu.memory_space<vmem>>, vector<8x128xf32>
    tpu.vector_store %arg10[%c0_17, %c0_18], %28 {strides = array<i32>} : memref<8x128xf32, #tpu.memory_space<vmem>>, vector<8x128xf32>,
    return
  }
  func.func @transform_0(%arg0: i32) -> (i32, i32) {
    %c0_i32 = arith.constant 0 : i32
    %c0_i32_0 = arith.constant 0 : i32
    return %arg0, %c0_i32 : i32, i32
  }
  func.func @transform_2(%arg0: i32) -> (i32, i32) {
    %c0_i32 = arith.constant 0 : i32
    %c0_i32_0 = arith.constant 0 : i32
    %c0_i32_1 = arith.constant 0 : i32
    return %c0_i32, %c0_i32_0 : i32, i32
  }
  func.func @transform_3(%arg0: i32) -> (i32, i32) {
    %c0_i32 = arith.constant 0 : i32
    %c0_i32_0 = arith.constant 0 : i32
    %c0_i32_1 = arith.constant 0 : i32
    return %c0_i32, %c0_i32_0 : i32, i32
  }
  func.func @transform_4(%arg0: i32) -> (i32, i32) {
    %c0_i32 = arith.constant 0 : i32
    %c0_i32_0 = arith.constant 0 : i32
    %c0_i32_1 = arith.constant 0 : i32
    return %c0_i32, %c0_i32_0 : i32, i32
  }
  func.func @transform_6(%arg0: i32) -> (i32, i32) {
    %c0_i32 = arith.constant 0 : i32
    %c0_i32_0 = arith.constant 0 : i32
    %c0_i32_1 = arith.constant 0 : i32
    return %c0_i32, %c0_i32_0 : i32, i32
  }
  func.func @transform_7(%arg0: i32) -> (i32, i32) {
    %c0_i32 = arith.constant 0 : i32
    %c0_i32_0 = arith.constant 0 : i32
    %c0_i32_1 = arith.constant 0 : i32
    return %c0_i32, %c0_i32_0 : i32, i32
  }
  func.func @transform_8(%arg0: i32) -> (i32, i32) {
    %c0_i32 = arith.constant 0 : i32
    %c0_i32_0 = arith.constant 0 : i32
    %c0_i32_1 = arith.constant 0 : i32
    return %c0_i32, %c0_i32_0 : i32, i32
  }
  func.func @transform_9(%arg0: i32) -> (i32, i32) {
    %c0_i32 = arith.constant 0 : i32
    %c0_i32_0 = arith.constant 0 : i32
    return %arg0, %c0_i32 : i32, i32
  }
  func.func @transform_10(%arg0: i32) -> i32 {
    %c0_i32 = arith.constant 0 : i32
    %c0_i32_0 = arith.constant 0 : i32
    return %c0_i32 : i32
  }
}

</mosaic_0001>

<llo_original>
// kernel: tpu_custom_call.1
$region0: #{tpu_custom_call.1}
  #allocation0 [shape = 'u32[]', space=smem, size = 0x4, offset = 0x4, fixed_abs, tag = 'smem constant byte address 0x4 - core index']
  #allocation1 [shape = 'u32[144,128]{1,0:T(1,128)}', space=vmem, size = 0x12000, scoped, tag = 'internal scratch']
  #allocation2 [shape = 'bf16[128,128]{1,0:T(16,128)(2,1)}', space=vmem, size = 0x8000, scoped, tag = 'scratch operand']
  #allocation3 [shape = 'bf16[128,128]{1,0:T(16,128)(2,1)}', space=vmem, size = 0x8000, scoped, tag = 'scratch operand']
  #allocation12 [shape = 's32[]', space=sflag, size = 0x4, offset = 0, fixed_abs, tag = 'sflag constant byte address 0x0 - dummy sync flag']
  #allocation15 [shape = 's32[]', space=sflag, size = 0x4, offset = 0, fixed_abs, tag = 'sflag constant byte address 0x0 - dummy sync flag']
  %s0 = inlined_call_operand.hbm [shape: bf16[8,128], index: 0, kind: input, shape index: {}]
  %s1 = inlined_call_operand.vmem [shape: f32[128,128], index: 1, kind: input, shape index: {}]
  %s2 = inlined_call_operand.vmem [shape: f32[128,5], index: 2, kind: input, shape index: {}]
  %s3 = inlined_call_operand.vmem [shape: f32[5,128], index: 3, kind: input, shape index: {}]
  %s4 = inlined_call_operand.vmem [shape: f32[1,128], index: 4, kind: input, shape index: {}]
  %s5 = inlined_call_operand.vmem [shape: f32[128,128], index: 5, kind: input, shape index: {}]
  %s6 = inlined_call_operand.vmem [shape: f32[128,5], index: 6, kind: input, shape index: {}]
  %s7 = inlined_call_operand.vmem [shape: f32[5,128], index: 7, kind: input, shape index: {}]
  %s8 = inlined_call_operand.vmem [shape: f32[1,128], index: 8, kind: input, shape index: {}]
  %s9 = inlined_call_operand.hbm [shape: f32[8,128], index: 9, kind: output, shape index: {0}]
  %s10 = inlined_call_operand.hbm [shape: f32[1], index: 10, kind: output, shape index: {1}]
  %11 = xla_tuple %s9, %s10
  %s12 = sld [smem:[#allocation0]]
  $region126: #{tpu_custom_call.1} parent=0
    _
  %s14 = ssub.s32 1, %s12
  %s15 = scalar_select 0, %s14, %s12
  $region1: #{tpu_custom_call.1} parent=0
    #allocation4 [shape = 'u8[2048]{0}', space=vmem, size = 0x800, scoped, tag = 'input window, operand 0, single buffered']
    #allocation5 [shape = 's32[1]{0}', space=sflag, size = 0x4, scoped, tag = 'scoped memory for tpu_custom_call.1']
    #allocation6 [shape = 's32[1]{0}', space=sflag, size = 0x4, scoped, tag = 'scoped memory for tpu_custom_call.1']
    #allocation7 [shape = 's32[1]{0}', space=sflag, size = 0x4, scoped, tag = 'scoped memory for tpu_custom_call.1']
    #allocation8 [shape = 'u8[4096]{0}', space=vmem, size = 0x1000, scoped, tag = 'output window, operand 0, single buffered']
    #allocation9 [shape = 'u8[512]{0}', space=smem, size = 0x200, scoped, tag = 'output window, operand 1, single buffered']
    %16 = vsyncpa [#allocation5], 0
    %17 = vsyncpa [#allocation6], 0
    %18 = vsyncpa [#allocation7], 0
    // Predicated region
    $region2: #{tpu_custom_call.1} parent=1 // pred_check
      _
    $region3: #{tpu_custom_call.1} parent=1 // pred_check_branch
      %20 = sbr.rel (0) target = $region5
    $region4: #{tpu_custom_call.1} parent=1 // pred_region
      %s22 = ssub.s32 64, 64
      %23 = vsyncadd [#allocation5], %s22
      %s25 = sshll.u32 [#allocation4], 4
      %s26 = int_to_ptr.vmem [resolvable:$true] %s25
      %28 = dma.hbm_to_vmem [thread:$0]  %s0, 64, %s26, [#allocation5]
    $region5: #{tpu_custom_call.1} parent=1 // pred_fallthru
      _
    // Predicated region
    $region6: #{tpu_custom_call.1} parent=1 // pred_check
      _
    $region7: #{tpu_custom_call.1} parent=1 // pred_check_branch
      %30 = sbr.rel (0) target = $region9
    $region8: #{tpu_custom_call.1} parent=1 // pred_region
      _
    $region9: #{tpu_custom_call.1} parent=1 // pred_fallthru
      _
    // Predicated region
    $region10: #{tpu_custom_call.1} parent=1 // pred_check
      _
    $region11: #{tpu_custom_call.1} parent=1 // pred_check_branch
      %32 = sbr.rel (0) target = $region13
    $region12: #{tpu_custom_call.1} parent=1 // pred_region
      _
    $region13: #{tpu_custom_call.1} parent=1 // pred_fallthru
      _
    // Predicated region
    $region14: #{tpu_custom_call.1} parent=1 // pred_check
      _
    $region15: #{tpu_custom_call.1} parent=1 // pred_check_branch
      %34 = sbr.rel (0) target = $region17
    $region16: #{tpu_custom_call.1} parent=1 // pred_region
      _
    $region17: #{tpu_custom_call.1} parent=1 // pred_fallthru
      _
    // Predicated region
    $region18: #{tpu_custom_call.1} parent=1 // pred_check
      _
    $region19: #{tpu_custom_call.1} parent=1 // pred_check_branch
      %36 = sbr.rel (0) target = $region21
    $region20: #{tpu_custom_call.1} parent=1 // pred_region
      _
    $region21: #{tpu_custom_call.1} parent=1 // pred_fallthru
      _
    // Predicated region
    $region22: #{tpu_custom_call.1} parent=1 // pred_check
      _
    $region23: #{tpu_custom_call.1} parent=1 // pred_check_branch
      %38 = sbr.rel (0) target = $region25
    $region24: #{tpu_custom_call.1} parent=1 // pred_region
      _
    $region25: #{tpu_custom_call.1} parent=1 // pred_fallthru
      _
    // Predicated region
    $region26: #{tpu_custom_call.1} parent=1 // pred_check
      _
    $region27: #{tpu_custom_call.1} parent=1 // pred_check_branch
      %40 = sbr.rel (0) target = $region29
    $region28: #{tpu_custom_call.1} parent=1 // pred_region
      _
    $region29: #{tpu_custom_call.1} parent=1 // pred_fallthru
      _
    // Predicated region
    $region30: #{tpu_custom_call.1} parent=1 // pred_check
      _
    $region31: #{tpu_custom_call.1} parent=1 // pred_check_branch
      %42 = sbr.rel (0) target = $region33
    $region32: #{tpu_custom_call.1} parent=1 // pred_region
      %43 = dma.done [#allocation5], 64
    $region33: #{tpu_custom_call.1} parent=1 // pred_fallthru
      _
    %p45 = scmp.eq.s32.totalorder 0, 0
    // Predicated region
    $region34: #{tpu_custom_call.1} parent=1 // pred_check
      %p46 = pneg %p45
    $region35: #{tpu_custom_call.1} parent=1 // pred_check_branch
      %48 = sbr.rel (%p46) target = $region37
    $region36: #{tpu_custom_call.1} parent=1 // pred_region
      %s49 = scalar_lea.smem [#allocation9], 0
      %50 = sst [smem:[%s49]] 0.0
      $region38: #{tpu_custom_call.1} parent=36
        #allocation10 [shape = 'u8[65536]{0}', space=vmem, size = 0x10000, scoped, tag = 'scoped memory for tpu_custom_call.1']
        $region39: #{tpu_custom_call.1} parent=38
          #allocation11 [shape = 's32[1]{0}', space=sflag, size = 0x4, scoped, tag = 'scoped memory for tpu_custom_call.1']
          %p52 = scmp.lt.u32.totalorder 128, 8
          %p53 = pneg %p52
          // Predicated region
          $region40: #{tpu_custom_call.1} parent=39 // pred_check
            _
          $region41: #{tpu_custom_call.1} parent=39 // pred_check_branch
            %55 = sbr.rel (%p52) target = $region43
          $region42: #{tpu_custom_call.1} parent=39 // pred_region
            %s70 = sand.u32 128, 7
            %p71 = scmp.eq.s32.totalorder %s70, 0
            // Predicated region
            $region55: #{tpu_custom_call.1} parent=42 // pred_check
              %p72 = pneg %p71
            $region56: #{tpu_custom_call.1} parent=42 // pred_check_branch
              %74 = sbr.rel (%p72) target = $region58
            $region57: #{tpu_custom_call.1} parent=42 // pred_region
              loop: start=0, step=1, limit=1
              $region59: #{tpu_custom_call.1} parent=57 // loop_pre_header
                _
              $region60: #{tpu_custom_call.1} parent=57 // loop_header
                %s76 = sphi 0, %s80
                %p77 = scmp.ge.s32.totalorder %s76, 1
                %s81 = sphi %s1, %s1
                %s82 = sphi [#allocation10], [#allocation10]
              $region61: #{tpu_custom_call.1} parent=57 // loop_header_branch
                %79 = sbr.rel (%p77) target = $region65
              $region62: #{tpu_custom_call.1} parent=57 // loop_body
                %v83 = vld [vmem:[%s81] sm:$0xff]
                %84 = vst [vmem:[%s82] sm:$0xff] %v83
                %v85 = vld [vmem:[%s81 + $0x8] sm:$0xff]
                %86 = vst [vmem:[%s82 + $0x8] sm:$0xff] %v85
                %v87 = vld [vmem:[%s81 + $0x10] sm:$0xff]
                %88 = vst [vmem:[%s82 + $0x10] sm:$0xff] %v87
                %v89 = vld [vmem:[%s81 + $0x18] sm:$0xff]
                %90 = vst [vmem:[%s82 + $0x18] sm:$0xff] %v89
                %v91 = vld [vmem:[%s81 + $0x20] sm:$0xff]
                %92 = vst [vmem:[%s82 + $0x20] sm:$0xff] %v91
                %v93 = vld [vmem:[%s81 + $0x28] sm:$0xff]
                %94 = vst [vmem:[%s82 + $0x28] sm:$0xff] %v93
                %v95 = vld [vmem:[%s81 + $0x30] sm:$0xff]
                %96 = vst [vmem:[%s82 + $0x30] sm:$0xff] %v95
                %v97 = vld [vmem:[%s81 + $0x38] sm:$0xff]
                %98 = vst [vmem:[%s82 + $0x38] sm:$0xff] %v97
                %v99 = vld [vmem:[%s81 + $0x40] sm:$0xff]
                %100 = vst [vmem:[%s82 + $0x40] sm:$0xff] %v99
                %v101 = vld [vmem:[%s81 + $0x48] sm:$0xff]
                %102 = vst [vmem:[%s82 + $0x48] sm:$0xff] %v101
                %v103 = vld [vmem:[%s81 + $0x50] sm:$0xff]
                %104 = vst [vmem:[%s82 + $0x50] sm:$0xff] %v103
                %v105 = vld [vmem:[%s81 + $0x58] sm:$0xff]
                %106 = vst [vmem:[%s82 + $0x58] sm:$0xff] %v105
                %v107 = vld [vmem:[%s81 + $0x60] sm:$0xff]
                %108 = vst [vmem:[%s82 + $0x60] sm:$0xff] %v107
                %v109 = vld [vmem:[%s81 + $0x68] sm:$0xff]
                %110 = vst [vmem:[%s82 + $0x68] sm:$0xff] %v109
                %v111 = vld [vmem:[%s81 + $0x70] sm:$0xff]
                %112 = vst [vmem:[%s82 + $0x70] sm:$0xff] %v111
                %v113 = vld [vmem:[%s81 + $0x78] sm:$0xff]
                %114 = vst [vmem:[%s82 + $0x78] sm:$0xff] %v113
              $region63: #{tpu_custom_call.1} parent=57 // loop_footer
                %s80 = sadd.s32 1, %s76
              $region64: #{tpu_custom_call.1} parent=57 // loop_footer_branch
                %75 = sbr.rel target = $region60
              $region65: #{tpu_custom_call.1} parent=57 // loop_exit
                _
            $region58: #{tpu_custom_call.1} parent=42 // pred_fallthru
              _
            %p115 = pneg %p71
            // Predicated region
            $region66: #{tpu_custom_call.1} parent=42 // pred_check
              _
            $region67: #{tpu_custom_call.1} parent=42 // pred_check_branch
              %117 = sbr.rel (%p71) target = $region69
            $region68: #{tpu_custom_call.1} parent=42 // pred_region
              %s118 = sand.u32 128, 7
            $region69: #{tpu_custom_call.1} parent=42 // pred_fallthru
              _
          $region43: #{tpu_custom_call.1} parent=39 // pred_fallthru
            _
          // Predicated region
          $region44: #{tpu_custom_call.1} parent=39 // pred_check
            %p56 = pneg %p52
          $region45: #{tpu_custom_call.1} parent=39 // pred_check_branch
            %58 = sbr.rel (%p56) target = $region47
          $region46: #{tpu_custom_call.1} parent=39 // pred_region
            %s59 = sshllo.u32 0, 128
            loop: start=0, step=1, limit=1
            $region48: #{tpu_custom_call.1} parent=46 // loop_pre_header
              _
            $region49: #{tpu_custom_call.1} parent=46 // loop_header
              %s61 = sphi 0, %s65
              %p62 = scmp.ge.s32.totalorder %s61, 1
              %s66 = sphi %s1, %s1
              %s67 = sphi [#allocation10], [#allocation10]
            $region50: #{tpu_custom_call.1} parent=46 // loop_header_branch
              %64 = sbr.rel (%p62) target = $region54
            $region51: #{tpu_custom_call.1} parent=46 // loop_body
              %v68 = vld [vmem:[%s66] sm:%s59]
              %69 = vst [vmem:[%s67] sm:%s59] %v68
            $region52: #{tpu_custom_call.1} parent=46 // loop_footer
              %s65 = sadd.s32 1, %s61
            $region53: #{tpu_custom_call.1} parent=46 // loop_footer_branch
              %60 = sbr.rel target = $region49
            $region54: #{tpu_custom_call.1} parent=46 // loop_exit
              _
          $region47: #{tpu_custom_call.1} parent=39 // pred_fallthru
            _
          // Predicated region
          $region70: #{tpu_custom_call.1} parent=39 // pred_check
            _
          $region71: #{tpu_custom_call.1} parent=39 // pred_check_branch
            %121 = sbr.rel (0) target = $region73
          $region72: #{tpu_custom_call.1} parent=39 // pred_region
            %122 = vsyncadd [#allocation11], 2048
          $region73: #{tpu_custom_call.1} parent=39 // pred_fallthru
            _
          %s123 = smul.u32 128, 1
          %s124 = sshll.u32 %s123, 4
          %125 = dma.done [#allocation11], %s124
        %v126 = vld [vmem:[#allocation10] sm:$0xff]
        %v127 = vld [vmem:[#allocation10 + $0x8] sm:$0xff]
        %v128 = vld [vmem:[#allocation10 + $0x10] sm:$0xff]
        %v129 = vld [vmem:[#allocation10 + $0x18] sm:$0xff]
        %v130 = vld [vmem:[#allocation10 + $0x20] sm:$0xff]
        %v131 = vld [vmem:[#allocation10 + $0x28] sm:$0xff]
        %v132 = vld [vmem:[#allocation10 + $0x30] sm:$0xff]
        %v133 = vld [vmem:[#allocation10 + $0x38] sm:$0xff]
        %v134 = vld [vmem:[#allocation10 + $0x40] sm:$0xff]
        %v135 = vld [vmem:[#allocation10 + $0x48] sm:$0xff]
        %v136 = vld [vmem:[#allocation10 + $0x50] sm:$0xff]
        %v137 = vld [vmem:[#allocation10 + $0x58] sm:$0xff]
        %v138 = vld [vmem:[#allocation10 + $0x60] sm:$0xff]
        %v139 = vld [vmem:[#allocation10 + $0x68] sm:$0xff]
        %v140 = vld [vmem:[#allocation10 + $0x70] sm:$0xff]
        %v141 = vld [vmem:[#allocation10 + $0x78] sm:$0xff]
        %v142 = vld [vmem:[%s2] sm:$0xff]
        %v143 = vld [vmem:[%s2 + $0x8] sm:$0xff]
        %v144 = vld [vmem:[%s2 + $0x10] sm:$0xff]
        %v145 = vld [vmem:[%s2 + $0x18] sm:$0xff]
        %v146 = vld [vmem:[%s2 + $0x20] sm:$0xff]
        %v147 = vld [vmem:[%s2 + $0x28] sm:$0xff]
        %v148 = vld [vmem:[%s2 + $0x30] sm:$0xff]
        %v149 = vld [vmem:[%s2 + $0x38] sm:$0xff]
        %v150 = vld [vmem:[%s2 + $0x40] sm:$0xff]
        %v151 = vld [vmem:[%s2 + $0x48] sm:$0xff]
        %v152 = vld [vmem:[%s2 + $0x50] sm:$0xff]
        %v153 = vld [vmem:[%s2 + $0x58] sm:$0xff]
        %v154 = vld [vmem:[%s2 + $0x60] sm:$0xff]
        %v155 = vld [vmem:[%s2 + $0x68] sm:$0xff]
        %v156 = vld [vmem:[%s2 + $0x70] sm:$0xff]
        %v157 = vld [vmem:[%s2 + $0x78] sm:$0xff]
        %v158 = vld [vmem:[%s3] sm:$0x1f]
        %v159 = vmul.f32 %v142, %v142
        %v160 = vmul.f32 %v143, %v143
        %v161 = vmul.f32 %v144, %v144
        %v162 = vmul.f32 %v145, %v145
        %v163 = vmul.f32 %v146, %v146
        %v164 = vmul.f32 %v147, %v147
        %v165 = vmul.f32 %v148, %v148
        %v166 = vmul.f32 %v149, %v149
        %v167 = vmul.f32 %v150, %v150
        %v168 = vmul.f32 %v151, %v151
        %v169 = vmul.f32 %v152, %v152
        %v170 = vmul.f32 %v153, %v153
        %v171 = vmul.f32 %v154, %v154
        %v172 = vmul.f32 %v155, %v155
        %v173 = vmul.f32 %v156, %v156
        %v174 = vmul.f32 %v157, %v157
        %vm175 = vcmask 39936
        %v176 = vsel %vm175, %v159, 0.0
        %177 = vadd.xlane.f32.xlu0 %v176
        %v178 = vpop.xlane.xlu0 %177
        %v179 = vsel %vm175, %v160, 0.0
        %180 = vadd.xlane.f32.xlu0 %v179
        %v181 = vpop.xlane.xlu0 %180
        %v182 = vsel %vm175, %v161, 0.0
        %183 = vadd.xlane.f32.xlu0 %v182
        %v184 = vpop.xlane.xlu0 %183
        %v185 = vsel %vm175, %v162, 0.0
        %186 = vadd.xlane.f32.xlu0 %v185
        %v187 = vpop.xlane.xlu0 %186
        %v188 = vsel %vm175, %v163, 0.0
        %189 = vadd.xlane.f32.xlu0 %v188
        %v190 = vpop.xlane.xlu0 %189
        %v191 = vsel %vm175, %v164, 0.0
        %192 = vadd.xlane.f32.xlu0 %v191
        %v193 = vpop.xlane.xlu0 %192
        %v194 = vsel %vm175, %v165, 0.0
        %195 = vadd.xlane.f32.xlu0 %v194
        %v196 = vpop.xlane.xlu0 %195
        %v197 = vsel %vm175, %v166, 0.0
        %198 = vadd.xlane.f32.xlu0 %v197
        %v199 = vpop.xlane.xlu0 %198
        %v200 = vsel %vm175, %v167, 0.0
        %201 = vadd.xlane.f32.xlu0 %v200
        %v202 = vpop.xlane.xlu0 %201
        %v203 = vsel %vm175, %v168, 0.0
        %204 = vadd.xlane.f32.xlu0 %v203
        %v205 = vpop.xlane.xlu0 %204
        %v206 = vsel %vm175, %v169, 0.0
        %207 = vadd.xlane.f32.xlu0 %v206
        %v208 = vpop.xlane.xlu0 %207
        %v209 = vsel %vm175, %v170, 0.0
        %210 = vadd.xlane.f32.xlu0 %v209
        %v211 = vpop.xlane.xlu0 %210
        %v212 = vsel %vm175, %v171, 0.0
        %213 = vadd.xlane.f32.xlu0 %v212
        %v214 = vpop.xlane.xlu0 %213
        %v215 = vsel %vm175, %v172, 0.0
        %216 = vadd.xlane.f32.xlu0 %v215
        %v217 = vpop.xlane.xlu0 %216
        %v218 = vsel %vm175, %v173, 0.0
        %219 = vadd.xlane.f32.xlu0 %v218
        %v220 = vpop.xlane.xlu0 %219
        %v221 = vsel %vm175, %v174, 0.0
        %222 = vadd.xlane.f32.xlu0 %v221
        %v223 = vpop.xlane.xlu0 %222
        %v224 = vmul.f32 %v158, %v158
        %vm225 = vcmask 1044480
        %v226 = vsel %vm225, %v224, 0.0
        %v227 = vrot.slane %v226, 4
        %v228 = vadd.f32 %v226, %v227
        %v229 = vrot.slane %v228, 2
        %v230 = vadd.f32 %v228, %v229
        %v231 = vrot.slane %v230, 1
        %v232 = vadd.f32 %v230, %v231
        %v234 = vsel %vm175, %v142, 0
        %v237 = vsel %vm175, %v143, 0
        %v240 = vsel %vm175, %v144, 0
        %v243 = vsel %vm175, %v145, 0
        %v246 = vsel %vm175, %v146, 0
        %v249 = vsel %vm175, %v147, 0
        %v252 = vsel %vm175, %v148, 0
        %v255 = vsel %vm175, %v149, 0
        %v258 = vsel %vm175, %v150, 0
        %v261 = vsel %vm175, %v151, 0
        %v264 = vsel %vm175, %v152, 0
        %v267 = vsel %vm175, %v153, 0
        %v270 = vsel %vm175, %v154, 0
        %v273 = vsel %vm175, %v155, 0
        %v276 = vsel %vm175, %v156, 0
        %v279 = vsel %vm175, %v157, 0
        %v282 = vsel %vm225, %v158, 0
        %284 = vmatprep.subr.mxu0 0.0
        %285 = vmatpush1.msra.mxu0 %v282
        %286 = vmatprep.subr.mxu0 0.0
        %287 = vmatpush1.msra.mxu0 0.0
        %288 = vmatprep.subr.mxu0 0.0
        %289 = vmatpush1.msra.mxu0 0.0
        %290 = vmatprep.subr.mxu0 0.0
        %291 = vmatpush1.msra.mxu0 0.0
        %292 = vmatprep.subr.mxu0 0.0
        %293 = vmatpush1.msra.mxu0 0.0
        %294 = vmatprep.subr.mxu0 0.0
        %295 = vmatpush1.msra.mxu0 0.0
        %296 = vmatprep.subr.mxu0 0.0
        %297 = vmatpush1.msra.mxu0 0.0
        %298 = vmatprep.subr.mxu0 0.0
        %299 = vmatpush1.msra.mxu0 0.0
        %300 = vmatprep.subr.mxu0 0.0
        %301 = vmatpush1.msra.mxu0 0.0
        %302 = vmatprep.subr.mxu0 0.0
        %303 = vmatpush1.msra.mxu0 0.0
        %304 = vmatprep.subr.mxu0 0.0
        %305 = vmatpush1.msra.mxu0 0.0
        %306 = vmatprep.subr.mxu0 0.0
        %307 = vmatpush1.msra.mxu0 0.0
        %308 = vmatprep.subr.mxu0 0.0
        %309 = vmatpush1.msra.mxu0 0.0
        %310 = vmatprep.subr.mxu0 0.0
        %311 = vmatpush1.msra.mxu0 0.0
        %312 = vmatprep.subr.mxu0 0.0
        %313 = vmatpush1.msra.mxu0 0.0
        %314 = vmatprep.subr.mxu0 0.0
        %315 = vmatpush1.msra.mxu0 0.0
        %316 = vmatprep.subr.mxu0 0.0
        %317 = vmatpush1.msra.mxu0 0.0
        %318 = vmatprep.subr.mxu0 0.0
        %319 = vmatpush1.msra.mxu0 0.0
        %320 = vmatprep.subr.mxu0 0.0
        %321 = vmatpush1.msra.mxu0 0.0
        %322 = vmatprep.subr.mxu0 0.0
        %323 = vmatpush1.msra.mxu0 0.0
        %324 = vmatprep.subr.mxu0 0.0
        %325 = vmatpush1.msra.mxu0 0.0
        %326 = vmatprep.subr.mxu0 0.0
        %327 = vmatpush1.msra.mxu0 0.0
        %328 = vmatprep.subr.mxu0 0.0
        %329 = vmatpush1.msra.mxu0 0.0
        %330 = vmatprep.subr.mxu0 0.0
        %331 = vmatpush1.msra.mxu0 0.0
        %332 = vmatprep.subr.mxu0 0.0
        %333 = vmatpush1.msra.mxu0 0.0
        %334 = vmatprep.subr.mxu0 0.0
        %335 = vmatpush1.msra.mxu0 0.0
        %336 = vmatprep.subr.mxu0 0.0
        %337 = vmatpush1.msra.mxu0 0.0
        %338 = vmatprep.subr.mxu0 0.0
        %339 = vmatpush1.msra.mxu0 0.0
        %340 = vmatprep.subr.mxu0 0.0
        %341 = vmatpush1.msra.mxu0 0.0
        %342 = vmatprep.subr.mxu0 0.0
        %343 = vmatpush1.msra.mxu0 0.0
        %344 = vmatprep.subr.mxu0 0.0
        %345 = vmatpush1.msra.mxu0 0.0
        %346 = vmatprep.subr.mxu0 0.0
        %347 = vmatpush1.msra.mxu0 0.0
        %348 = vmatprep.mubr.f32.mxu0 0.0
        %349 = vmatmul.mubr.f32.gmra.mrb[0].mxu0 %v234
        %v350 = vpop.f32.mrb[0].mxu0
        %v351 = vadd.f32 0.0, %v350
        %v352 = vpop.f32.mrb[0].mxu0
        %353 = vmatprep.mubr.f32.mxu0 0.0
        %354 = vmatmul.mubr.f32.gmra.mrb[0].mxu0 %v237
        %v355 = vpop.f32.mrb[0].mxu0
        %v356 = vadd.f32 0.0, %v355
        %v357 = vpop.f32.mrb[0].mxu0
        %358 = vmatprep.mubr.f32.mxu0 0.0
        %359 = vmatmul.mubr.f32.gmra.mrb[0].mxu0 %v240
        %v360 = vpop.f32.mrb[0].mxu0
        %v361 = vadd.f32 0.0, %v360
        %v362 = vpop.f32.mrb[0].mxu0
        %363 = vmatprep.mubr.f32.mxu0 0.0
        %364 = vmatmul.mubr.f32.gmra.mrb[0].mxu0 %v243
        %v365 = vpop.f32.mrb[0].mxu0
        %v366 = vadd.f32 0.0, %v365
        %v367 = vpop.f32.mrb[0].mxu0
        %368 = vmatprep.mubr.f32.mxu0 0.0
        %369 = vmatmul.mubr.f32.gmra.mrb[0].mxu0 %v246
        %v370 = vpop.f32.mrb[0].mxu0
        %v371 = vadd.f32 0.0, %v370
        %v372 = vpop.f32.mrb[0].mxu0
        %373 = vmatprep.mubr.f32.mxu0 0.0
        %374 = vmatmul.mubr.f32.gmra.mrb[0].mxu0 %v249
        %v375 = vpop.f32.mrb[0].mxu0
        %v376 = vadd.f32 0.0, %v375
        %v377 = vpop.f32.mrb[0].mxu0
        %378 = vmatprep.mubr.f32.mxu0 0.0
        %379 = vmatmul.mubr.f32.gmra.mrb[0].mxu0 %v252
        %v380 = vpop.f32.mrb[0].mxu0
        %v381 = vadd.f32 0.0, %v380
        %v382 = vpop.f32.mrb[0].mxu0
        %383 = vmatprep.mubr.f32.mxu0 0.0
        %384 = vmatmul.mubr.f32.gmra.mrb[0].mxu0 %v255
        %v385 = vpop.f32.mrb[0].mxu0
        %v386 = vadd.f32 0.0, %v385
        %v387 = vpop.f32.mrb[0].mxu0
        %388 = vmatprep.mubr.f32.mxu0 0.0
        %389 = vmatmul.mubr.f32.gmra.mrb[0].mxu0 %v258
        %v390 = vpop.f32.mrb[0].mxu0
        %v391 = vadd.f32 0.0, %v390
        %v392 = vpop.f32.mrb[0].mxu0
        %393 = vmatprep.mubr.f32.mxu0 0.0
        %394 = vmatmul.mubr.f32.gmra.mrb[0].mxu0 %v261
        %v395 = vpop.f32.mrb[0].mxu0
        %v396 = vadd.f32 0.0, %v395
        %v397 = vpop.f32.mrb[0].mxu0
        %398 = vmatprep.mubr.f32.mxu0 0.0
        %399 = vmatmul.mubr.f32.gmra.mrb[0].mxu0 %v264
        %v400 = vpop.f32.mrb[0].mxu0
        %v401 = vadd.f32 0.0, %v400
        %v402 = vpop.f32.mrb[0].mxu0
        %403 = vmatprep.mubr.f32.mxu0 0.0
        %404 = vmatmul.mubr.f32.gmra.mrb[0].mxu0 %v267
        %v405 = vpop.f32.mrb[0].mxu0
        %v406 = vadd.f32 0.0, %v405
        %v407 = vpop.f32.mrb[0].mxu0
        %408 = vmatprep.mubr.f32.mxu0 0.0
        %409 = vmatmul.mubr.f32.gmra.mrb[0].mxu0 %v270
        %v410 = vpop.f32.mrb[0].mxu0
        %v411 = vadd.f32 0.0, %v410
        %v412 = vpop.f32.mrb[0].mxu0
        %413 = vmatprep.mubr.f32.mxu0 0.0
        %414 = vmatmul.mubr.f32.gmra.mrb[0].mxu0 %v273
        %v415 = vpop.f32.mrb[0].mxu0
        %v416 = vadd.f32 0.0, %v415
        %v417 = vpop.f32.mrb[0].mxu0
        %418 = vmatprep.mubr.f32.mxu0 0.0
        %419 = vmatmul.mubr.f32.gmra.mrb[0].mxu0 %v276
        %v420 = vpop.f32.mrb[0].mxu0
        %v421 = vadd.f32 0.0, %v420
        %v422 = vpop.f32.mrb[0].mxu0
        %423 = vmatprep.mubr.f32.mxu0 0.0
        %424 = vmatmul.mubr.f32.gmra.mrb[0].mxu0 %v279
        %v425 = vpop.f32.mrb[0].mxu0
        %v426 = vadd.f32 0.0, %v425
        %v427 = vpop.f32.mrb[0].mxu0
        %428 = vdwg.mxu0
        %v429 = vadd.f32 %v178, %v232
        %v430 = vadd.f32 %v181, %v232
        %v431 = vadd.f32 %v184, %v232
        %v432 = vadd.f32 %v187, %v232
        %v433 = vadd.f32 %v190, %v232
        %v434 = vadd.f32 %v193, %v232
        %v435 = vadd.f32 %v196, %v232
        %v436 = vadd.f32 %v199, %v232
        %v437 = vadd.f32 %v202, %v232
        %v438 = vadd.f32 %v205, %v232
        %v439 = vadd.f32 %v208, %v232
        %v440 = vadd.f32 %v211, %v232
        %v441 = vadd.f32 %v214, %v232
        %v442 = vadd.f32 %v217, %v232
        %v443 = vadd.f32 %v220, %v232
        %v444 = vadd.f32 %v223, %v232
        %v445 = vmul.f32 %v351, 2.0
        %v446 = vmul.f32 %v356, 2.0
        %v447 = vmul.f32 %v361, 2.0
        %v448 = vmul.f32 %v366, 2.0
        %v449 = vmul.f32 %v371, 2.0
        %v450 = vmul.f32 %v376, 2.0
        %v451 = vmul.f32 %v381, 2.0
        %v452 = vmul.f32 %v386, 2.0
        %v453 = vmul.f32 %v391, 2.0
        %v454 = vmul.f32 %v396, 2.0
        %v455 = vmul.f32 %v401, 2.0
        %v456 = vmul.f32 %v406, 2.0
        %v457 = vmul.f32 %v411, 2.0
        %v458 = vmul.f32 %v416, 2.0
        %v459 = vmul.f32 %v421, 2.0
        %v460 = vmul.f32 %v426, 2.0
        %v461 = vsub.f32 %v429, %v445
        %v462 = vsub.f32 %v430, %v446
        %v463 = vsub.f32 %v431, %v447
        %v464 = vsub.f32 %v432, %v448
        %v465 = vsub.f32 %v433, %v449
        %v466 = vsub.f32 %v434, %v450
        %v467 = vsub.f32 %v435, %v451
        %v468 = vsub.f32 %v436, %v452
        %v469 = vsub.f32 %v437, %v453
        %v470 = vsub.f32 %v438, %v454
        %v471 = vsub.f32 %v439, %v455
        %v472 = vsub.f32 %v440, %v456
        %v473 = vsub.f32 %v441, %v457
        %v474 = vsub.f32 %v442, %v458
        %v475 = vsub.f32 %v443, %v459
        %v476 = vsub.f32 %v444, %v460
        %v477 = vmax.f32 %v461, 0.0
        %v478 = vmax.f32 %v462, 0.0
        %v479 = vmax.f32 %v463, 0.0
        %v480 = vmax.f32 %v464, 0.0
        %v481 = vmax.f32 %v465, 0.0
        %v482 = vmax.f32 %v466, 0.0
        %v483 = vmax.f32 %v467, 0.0
        %v484 = vmax.f32 %v468, 0.0
        %v485 = vmax.f32 %v469, 0.0
        %v486 = vmax.f32 %v470, 0.0
        %v487 = vmax.f32 %v471, 0.0
        %v488 = vmax.f32 %v472, 0.0
        %v489 = vmax.f32 %v473, 0.0
        %v490 = vmax.f32 %v474, 0.0
        %v491 = vmax.f32 %v475, 0.0
        %v492 = vmax.f32 %v476, 0.0
        %v493 = vsub.f32 0.0, %v477
        %v494 = vsub.f32 0.0, %v478
        %v495 = vsub.f32 0.0, %v479
        %v496 = vsub.f32 0.0, %v480
        %v497 = vsub.f32 0.0, %v481
        %v498 = vsub.f32 0.0, %v482
        %v499 = vsub.f32 0.0, %v483
        %v500 = vsub.f32 0.0, %v484
        %v501 = vsub.f32 0.0, %v485
        %v502 = vsub.f32 0.0, %v486
        %v503 = vsub.f32 0.0, %v487
        %v504 = vsub.f32 0.0, %v488
        %v505 = vsub.f32 0.0, %v489
        %v506 = vsub.f32 0.0, %v490
        %v507 = vsub.f32 0.0, %v491
        %v508 = vsub.f32 0.0, %v492
        %v509 = vmul.f32 %v493, 1.442695
        %v510 = vpow.pop %v509
        %v511 = vmul.f32 %v494, 1.442695
        %v512 = vpow.pop %v511
        %v513 = vmul.f32 %v495, 1.442695
        %v514 = vpow.pop %v513
        %v515 = vmul.f32 %v496, 1.442695
        %v516 = vpow.pop %v515
        %v517 = vmul.f32 %v497, 1.442695
        %v518 = vpow.pop %v517
        %v519 = vmul.f32 %v498, 1.442695
        %v520 = vpow.pop %v519
        %v521 = vmul.f32 %v499, 1.442695
        %v522 = vpow.pop %v521
        %v523 = vmul.f32 %v500, 1.442695
        %v524 = vpow.pop %v523
        %v525 = vmul.f32 %v501, 1.442695
        %v526 = vpow.pop %v525
        %v527 = vmul.f32 %v502, 1.442695
        %v528 = vpow.pop %v527
        %v529 = vmul.f32 %v503, 1.442695
        %v530 = vpow.pop %v529
        %v531 = vmul.f32 %v504, 1.442695
        %v532 = vpow.pop %v531
        %v533 = vmul.f32 %v505, 1.442695
        %v534 = vpow.pop %v533
        %v535 = vmul.f32 %v506, 1.442695
        %v536 = vpow.pop %v535
        %v537 = vmul.f32 %v507, 1.442695
        %v538 = vpow.pop %v537
        %v539 = vmul.f32 %v508, 1.442695
        %v540 = vpow.pop %v539
        %v541 = vlaneseq
        %v542 = vshrl.u32 %v541, 7
        %v543 = vadd.s32 %v542, 8
        %v544 = vadd.s32 %v542, 16
        %v545 = vadd.s32 %v542, 24
        %v546 = vadd.s32 %v542, 32
        %v547 = vadd.s32 %v542, 40
        %v548 = vadd.s32 %v542, 48
        %v549 = vadd.s32 %v542, 56
        %v550 = vadd.s32 %v542, 64
        %v551 = vadd.s32 %v542, 72
        %v552 = vadd.s32 %v542, 80
        %v553 = vadd.s32 %v542, 88
        %v554 = vadd.s32 %v542, 96
        %v555 = vadd.s32 %v542, 104
        %v556 = vadd.s32 %v542, 112
        %v557 = vadd.s32 %v542, 120
        %v558 = vlaneseq
        %v559 = vand.u32 %v558, 127
        %vm560 = vcmp.lt.s32.totalorder %v542, 32
        %vm561 = vcmp.lt.s32.totalorder %v543, 32
        %vm562 = vcmp.lt.s32.totalorder %v544, 32
        %vm563 = vcmp.lt.s32.totalorder %v545, 32
        %vm564 = vcmp.lt.s32.totalorder %v546, 32
        %vm565 = vcmp.lt.s32.totalorder %v547, 32
        %vm566 = vcmp.lt.s32.totalorder %v548, 32
        %vm567 = vcmp.lt.s32.totalorder %v549, 32
        %vm568 = vcmp.lt.s32.totalorder %v550, 32
        %vm569 = vcmp.lt.s32.totalorder %v551, 32
        %vm570 = vcmp.lt.s32.totalorder %v552, 32
        %vm571 = vcmp.lt.s32.totalorder %v553, 32
        %vm572 = vcmp.lt.s32.totalorder %v554, 32
        %vm573 = vcmp.lt.s32.totalorder %v555, 32
        %vm574 = vcmp.lt.s32.totalorder %v556, 32
        %vm575 = vcmp.lt.s32.totalorder %v557, 32
        %vm576 = vcmp.lt.s32.totalorder %v559, 64
        %vm577 = vmand %vm560, %vm576
        %vm578 = vmand %vm561, %vm576
        %vm579 = vmand %vm562, %vm576
        %vm580 = vmand %vm563, %vm576
        %vm581 = vmand %vm564, %vm576
        %vm582 = vmand %vm565, %vm576
        %vm583 = vmand %vm566, %vm576
        %vm584 = vmand %vm567, %vm576
        %vm585 = vmand %vm568, %vm576
        %vm586 = vmand %vm569, %vm576
        %vm587 = vmand %vm570, %vm576
        %vm588 = vmand %vm571, %vm576
        %vm589 = vmand %vm572, %vm576
        %vm590 = vmand %vm573, %vm576
        %vm591 = vmand %vm574, %vm576
        %vm592 = vmand %vm575, %vm576
        %v593 = vsel %vm577, %v510, 0.0
        %v594 = vsel %vm578, %v512, 0.0
        %v595 = vsel %vm579, %v514, 0.0
        %v596 = vsel %vm580, %v516, 0.0
        %v597 = vsel %vm581, %v518, 0.0
        %v598 = vsel %vm582, %v520, 0.0
        %v599 = vsel %vm583, %v522, 0.0
        %v600 = vsel %vm584, %v524, 0.0
        %v601 = vsel %vm585, %v526, 0.0
        %v602 = vsel %vm586, %v528, 0.0
        %v603 = vsel %vm587, %v530, 0.0
        %v604 = vsel %vm588, %v532, 0.0
        %v605 = vsel %vm589, %v534, 0.0
        %v606 = vsel %vm590, %v536, 0.0
        %v607 = vsel %vm591, %v538, 0.0
        %v608 = vsel %vm592, %v540, 0.0
        %s609 = sld [smem:[#allocation9]]
        %v610 = vmul.f32 %v593, %v593
        %v611 = vmul.f32 %v594, %v594
        %v612 = vmul.f32 %v595, %v595
        %v613 = vmul.f32 %v596, %v596
        %v614 = vmul.f32 %v597, %v597
        %v615 = vmul.f32 %v598, %v598
        %v616 = vmul.f32 %v599, %v599
        %v617 = vmul.f32 %v600, %v600
        %v618 = vmul.f32 %v601, %v601
        %v619 = vmul.f32 %v602, %v602
        %v620 = vmul.f32 %v603, %v603
        %v621 = vmul.f32 %v604, %v604
        %v622 = vmul.f32 %v605, %v605
        %v623 = vmul.f32 %v606, %v606
        %v624 = vmul.f32 %v607, %v607
        %v625 = vmul.f32 %v608, %v608
        %v626 = vadd.f32 %v610, %v611
        %v627 = vadd.f32 %v626, %v612
        %v628 = vadd.f32 %v627, %v613
        %v629 = vadd.f32 %v628, %v614
        %v630 = vadd.f32 %v629, %v615
        %v631 = vadd.f32 %v630, %v616
        %v632 = vadd.f32 %v631, %v617
        %v633 = vadd.f32 %v632, %v618
        %v634 = vadd.f32 %v633, %v619
        %v635 = vadd.f32 %v634, %v620
        %v636 = vadd.f32 %v635, %v621
        %v637 = vadd.f32 %v636, %v622
        %v638 = vadd.f32 %v637, %v623
        %v639 = vadd.f32 %v638, %v624
        %v640 = vadd.f32 %v639, %v625
        %641 = vadd.xlane.f32.xlu0 %v640
        %v642 = vpop.xlane.xlu0 %641
        %v643 = vrot.slane %v642, 4
        %v644 = vadd.f32 %v642, %v643
        %v645 = vrot.slane %v644, 2
        %v646 = vadd.f32 %v644, %v645
        %v647 = vrot.slane %v646, 1
        %v648 = vadd.f32 %v646, %v647
        %s649 = vtos %v648
        %s650 = smul.f32 %s649, 0.0065
        %v651 = vmul.f32 %v126, %v126
        %v652 = vmul.f32 %v127, %v127
        %v653 = vmul.f32 %v128, %v128
        %v654 = vmul.f32 %v129, %v129
        %v655 = vmul.f32 %v130, %v130
        %v656 = vmul.f32 %v131, %v131
        %v657 = vmul.f32 %v132, %v132
        %v658 = vmul.f32 %v133, %v133
        %v659 = vmul.f32 %v134, %v134
        %v660 = vmul.f32 %v135, %v135
        %v661 = vmul.f32 %v136, %v136
        %v662 = vmul.f32 %v137, %v137
        %v663 = vmul.f32 %v138, %v138
        %v664 = vmul.f32 %v139, %v139
        %v665 = vmul.f32 %v140, %v140
        %v666 = vmul.f32 %v141, %v141
        %v667 = vadd.f32 %v651, %v652
        %v668 = vadd.f32 %v667, %v653
        %v669 = vadd.f32 %v668, %v654
        %v670 = vadd.f32 %v669, %v655
        %v671 = vadd.f32 %v670, %v656
        %v672 = vadd.f32 %v671, %v657
        %v673 = vadd.f32 %v672, %v658
        %v674 = vadd.f32 %v673, %v659
        %v675 = vadd.f32 %v674, %v660
        %v676 = vadd.f32 %v675, %v661
        %v677 = vadd.f32 %v676, %v662
        %v678 = vadd.f32 %v677, %v663
        %v679 = vadd.f32 %v678, %v664
        %v680 = vadd.f32 %v679, %v665
        %v681 = vadd.f32 %v680, %v666
        %682 = vadd.xlane.f32.xlu0 %v681
        %v683 = vpop.xlane.xlu0 %682
        %v684 = vrot.slane %v683, 4
        %v685 = vadd.f32 %v683, %v684
        %v686 = vrot.slane %v685, 2
        %v687 = vadd.f32 %v685, %v686
        %v688 = vrot.slane %v687, 1
        %v689 = vadd.f32 %v687, %v688
        %s690 = vtos %v689
        %s691 = smul.f32 %s690, 30.0
        %s692 = sadd.f32 %s650, %s691
        %s693 = sadd.f32 %s609, %s692
        %694 = sst [smem:[%s49]] %s693
        %v695 = vmul.f32 %v126, %v593
        %v696 = vmul.f32 %v127, %v594
        %v697 = vmul.f32 %v128, %v595
        %v698 = vmul.f32 %v129, %v596
        %v699 = vmul.f32 %v130, %v597
        %v700 = vmul.f32 %v131, %v598
        %v701 = vmul.f32 %v132, %v599
        %v702 = vmul.f32 %v133, %v600
        %v703 = vmul.f32 %v134, %v601
        %v704 = vmul.f32 %v135, %v602
        %v705 = vmul.f32 %v136, %v603
        %v706 = vmul.f32 %v137, %v604
        %v707 = vmul.f32 %v138, %v605
        %v708 = vmul.f32 %v139, %v606
        %v709 = vmul.f32 %v140, %v607
        %v710 = vmul.f32 %v141, %v608
        %v711 = vpack.c.bf16 %v696, %v695
        %v712 = vpack.c.bf16 %v698, %v697
        %v713 = vpack.c.bf16 %v700, %v699
        %v714 = vpack.c.bf16 %v702, %v701
        %v715 = vpack.c.bf16 %v704, %v703
        %v716 = vpack.c.bf16 %v706, %v705
        %v717 = vpack.c.bf16 %v708, %v707
        %v718 = vpack.c.bf16 %v710, %v709
        %719 = vst [vmem:[#allocation2] sm:$0xff] %v711
        %720 = vst [vmem:[#allocation2 + $0x8] sm:$0xff] %v712
        %721 = vst [vmem:[#allocation2 + $0x10] sm:$0xff] %v713
        %722 = vst [vmem:[#allocation2 + $0x18] sm:$0xff] %v714
        %723 = vst [vmem:[#allocation2 + $0x20] sm:$0xff] %v715
        %724 = vst [vmem:[#allocation2 + $0x28] sm:$0xff] %v716
        %725 = vst [vmem:[#allocation2 + $0x30] sm:$0xff] %v717
        %726 = vst [vmem:[#allocation2 + $0x38] sm:$0xff] %v718
      $region74: #{tpu_custom_call.1} parent=36
        #allocation13 [shape = 'u8[65536]{0}', space=vmem, size = 0x10000, scoped, tag = 'scoped memory for tpu_custom_call.1']
        $region75: #{tpu_custom_call.1} parent=74
          #allocation14 [shape = 's32[1]{0}', space=sflag, size = 0x4, scoped, tag = 'scoped memory for tpu_custom_call.1']
          %p728 = scmp.lt.u32.totalorder 128, 8
          %p729 = pneg %p728
          // Predicated region
          $region76: #{tpu_custom_call.1} parent=75 // pred_check
            _
          $region77: #{tpu_custom_call.1} parent=75 // pred_check_branch
            %731 = sbr.rel (%p728) target = $region79
          $region78: #{tpu_custom_call.1} parent=75 // pred_region
            %s746 = sand.u32 128, 7
            %p747 = scmp.eq.s32.totalorder %s746, 0
            // Predicated region
            $region91: #{tpu_custom_call.1} parent=78 // pred_check
              %p748 = pneg %p747
            $region92: #{tpu_custom_call.1} parent=78 // pred_check_branch
              %750 = sbr.rel (%p748) target = $region94
            $region93: #{tpu_custom_call.1} parent=78 // pred_region
              loop: start=0, step=1, limit=1
              $region95: #{tpu_custom_call.1} parent=93 // loop_pre_header
                _
              $region96: #{tpu_custom_call.1} parent=93 // loop_header
                %s752 = sphi 0, %s756
                %p753 = scmp.ge.s32.totalorder %s752, 1
                %s757 = sphi %s5, %s5
                %s758 = sphi [#allocation13], [#allocation13]
              $region97: #{tpu_custom_call.1} parent=93 // loop_header_branch
                %755 = sbr.rel (%p753) target = $region101
              $region98: #{tpu_custom_call.1} parent=93 // loop_body
                %v759 = vld [vmem:[%s757] sm:$0xff]
                %760 = vst [vmem:[%s758] sm:$0xff] %v759
                %v761 = vld [vmem:[%s757 + $0x8] sm:$0xff]
                %762 = vst [vmem:[%s758 + $0x8] sm:$0xff] %v761
                %v763 = vld [vmem:[%s757 + $0x10] sm:$0xff]
                %764 = vst [vmem:[%s758 + $0x10] sm:$0xff] %v763
                %v765 = vld [vmem:[%s757 + $0x18] sm:$0xff]
                %766 = vst [vmem:[%s758 + $0x18] sm:$0xff] %v765
                %v767 = vld [vmem:[%s757 + $0x20] sm:$0xff]
                %768 = vst [vmem:[%s758 + $0x20] sm:$0xff] %v767
                %v769 = vld [vmem:[%s757 + $0x28] sm:$0xff]
                %770 = vst [vmem:[%s758 + $0x28] sm:$0xff] %v769
                %v771 = vld [vmem:[%s757 + $0x30] sm:$0xff]
                %772 = vst [vmem:[%s758 + $0x30] sm:$0xff] %v771
                %v773 = vld [vmem:[%s757 + $0x38] sm:$0xff]
                %774 = vst [vmem:[%s758 + $0x38] sm:$0xff] %v773
                %v775 = vld [vmem:[%s757 + $0x40] sm:$0xff]
                %776 = vst [vmem:[%s758 + $0x40] sm:$0xff] %v775
                %v777 = vld [vmem:[%s757 + $0x48] sm:$0xff]
                %778 = vst [vmem:[%s758 + $0x48] sm:$0xff] %v777
                %v779 = vld [vmem:[%s757 + $0x50] sm:$0xff]
                %780 = vst [vmem:[%s758 + $0x50] sm:$0xff] %v779
                %v781 = vld [vmem:[%s757 + $0x58] sm:$0xff]
                %782 = vst [vmem:[%s758 + $0x58] sm:$0xff] %v781
                %v783 = vld [vmem:[%s757 + $0x60] sm:$0xff]
                %784 = vst [vmem:[%s758 + $0x60] sm:$0xff] %v783
                %v785 = vld [vmem:[%s757 + $0x68] sm:$0xff]
                %786 = vst [vmem:[%s758 + $0x68] sm:$0xff] %v785
                %v787 = vld [vmem:[%s757 + $0x70] sm:$0xff]
                %788 = vst [vmem:[%s758 + $0x70] sm:$0xff] %v787
                %v789 = vld [vmem:[%s757 + $0x78] sm:$0xff]
                %790 = vst [vmem:[%s758 + $0x78] sm:$0xff] %v789
              $region99: #{tpu_custom_call.1} parent=93 // loop_footer
                %s756 = sadd.s32 1, %s752
              $region100: #{tpu_custom_call.1} parent=93 // loop_footer_branch
                %751 = sbr.rel target = $region96
              $region101: #{tpu_custom_call.1} parent=93 // loop_exit
                _
            $region94: #{tpu_custom_call.1} parent=78 // pred_fallthru
              _
            %p791 = pneg %p747
            // Predicated region
            $region102: #{tpu_custom_call.1} parent=78 // pred_check
              _
            $region103: #{tpu_custom_call.1} parent=78 // pred_check_branch
              %793 = sbr.rel (%p747) target = $region105
            $region104: #{tpu_custom_call.1} parent=78 // pred_region
              %s794 = sand.u32 128, 7
            $region105: #{tpu_custom_call.1} parent=78 // pred_fallthru
              _
          $region79: #{tpu_custom_call.1} parent=75 // pred_fallthru
            _
          // Predicated region
          $region80: #{tpu_custom_call.1} parent=75 // pred_check
            %p732 = pneg %p728
          $region81: #{tpu_custom_call.1} parent=75 // pred_check_branch
            %734 = sbr.rel (%p732) target = $region83
          $region82: #{tpu_custom_call.1} parent=75 // pred_region
            %s735 = sshllo.u32 0, 128
            loop: start=0, step=1, limit=1
            $region84: #{tpu_custom_call.1} parent=82 // loop_pre_header
              _
            $region85: #{tpu_custom_call.1} parent=82 // loop_header
              %s737 = sphi 0, %s741
              %p738 = scmp.ge.s32.totalorder %s737, 1
              %s742 = sphi %s5, %s5
              %s743 = sphi [#allocation13], [#allocation13]
            $region86: #{tpu_custom_call.1} parent=82 // loop_header_branch
              %740 = sbr.rel (%p738) target = $region90
            $region87: #{tpu_custom_call.1} parent=82 // loop_body
              %v744 = vld [vmem:[%s742] sm:%s735]
              %745 = vst [vmem:[%s743] sm:%s735] %v744
            $region88: #{tpu_custom_call.1} parent=82 // loop_footer
              %s741 = sadd.s32 1, %s737
            $region89: #{tpu_custom_call.1} parent=82 // loop_footer_branch
              %736 = sbr.rel target = $region85
            $region90: #{tpu_custom_call.1} parent=82 // loop_exit
              _
          $region83: #{tpu_custom_call.1} parent=75 // pred_fallthru
            _
          // Predicated region
          $region106: #{tpu_custom_call.1} parent=75 // pred_check
            _
          $region107: #{tpu_custom_call.1} parent=75 // pred_check_branch
            %797 = sbr.rel (0) target = $region109
          $region108: #{tpu_custom_call.1} parent=75 // pred_region
            %798 = vsyncadd [#allocation14], 2048
          $region109: #{tpu_custom_call.1} parent=75 // pred_fallthru
            _
          %s799 = smul.u32 128, 1
          %s800 = sshll.u32 %s799, 4
          %801 = dma.done [#allocation14], %s800
        %v802 = vld [vmem:[#allocation13] sm:$0xff]
        %v803 = vld [vmem:[#allocation13 + $0x8] sm:$0xff]
        %v804 = vld [vmem:[#allocation13 + $0x10] sm:$0xff]
        %v805 = vld [vmem:[#allocation13 + $0x18] sm:$0xff]
        %v806 = vld [vmem:[#allocation13 + $0x20] sm:$0xff]
        %v807 = vld [vmem:[#allocation13 + $0x28] sm:$0xff]
        %v808 = vld [vmem:[#allocation13 + $0x30] sm:$0xff]
        %v809 = vld [vmem:[#allocation13 + $0x38] sm:$0xff]
        %v810 = vld [vmem:[#allocation13 + $0x40] sm:$0xff]
        %v811 = vld [vmem:[#allocation13 + $0x48] sm:$0xff]
        %v812 = vld [vmem:[#allocation13 + $0x50] sm:$0xff]
        %v813 = vld [vmem:[#allocation13 + $0x58] sm:$0xff]
        %v814 = vld [vmem:[#allocation13 + $0x60] sm:$0xff]
        %v815 = vld [vmem:[#allocation13 + $0x68] sm:$0xff]
        %v816 = vld [vmem:[#allocation13 + $0x70] sm:$0xff]
        %v817 = vld [vmem:[#allocation13 + $0x78] sm:$0xff]
        %v818 = vld [vmem:[%s6] sm:$0xff]
        %v819 = vld [vmem:[%s6 + $0x8] sm:$0xff]
        %v820 = vld [vmem:[%s6 + $0x10] sm:$0xff]
        %v821 = vld [vmem:[%s6 + $0x18] sm:$0xff]
        %v822 = vld [vmem:[%s6 + $0x20] sm:$0xff]
        %v823 = vld [vmem:[%s6 + $0x28] sm:$0xff]
        %v824 = vld [vmem:[%s6 + $0x30] sm:$0xff]
        %v825 = vld [vmem:[%s6 + $0x38] sm:$0xff]
        %v826 = vld [vmem:[%s6 + $0x40] sm:$0xff]
        %v827 = vld [vmem:[%s6 + $0x48] sm:$0xff]
        %v828 = vld [vmem:[%s6 + $0x50] sm:$0xff]
        %v829 = vld [vmem:[%s6 + $0x58] sm:$0xff]
        %v830 = vld [vmem:[%s6 + $0x60] sm:$0xff]
        %v831 = vld [vmem:[%s6 + $0x68] sm:$0xff]
        %v832 = vld [vmem:[%s6 + $0x70] sm:$0xff]
        %v833 = vld [vmem:[%s6 + $0x78] sm:$0xff]
        %v834 = vld [vmem:[%s7] sm:$0x1f]
        %v835 = vmul.f32 %v818, %v818
        %v836 = vmul.f32 %v819, %v819
        %v837 = vmul.f32 %v820, %v820
        %v838 = vmul.f32 %v821, %v821
        %v839 = vmul.f32 %v822, %v822
        %v840 = vmul.f32 %v823, %v823
        %v841 = vmul.f32 %v824, %v824
        %v842 = vmul.f32 %v825, %v825
        %v843 = vmul.f32 %v826, %v826
        %v844 = vmul.f32 %v827, %v827
        %v845 = vmul.f32 %v828, %v828
        %v846 = vmul.f32 %v829, %v829
        %v847 = vmul.f32 %v830, %v830
        %v848 = vmul.f32 %v831, %v831
        %v849 = vmul.f32 %v832, %v832
        %v850 = vmul.f32 %v833, %v833
        %vm851 = vcmask 39936
        %v852 = vsel %vm851, %v835, 0.0
        %853 = vadd.xlane.f32.xlu0 %v852
        %v854 = vpop.xlane.xlu0 %853
        %v855 = vsel %vm851, %v836, 0.0
        %856 = vadd.xlane.f32.xlu0 %v855
        %v857 = vpop.xlane.xlu0 %856
        %v858 = vsel %vm851, %v837, 0.0
        %859 = vadd.xlane.f32.xlu0 %v858
        %v860 = vpop.xlane.xlu0 %859
        %v861 = vsel %vm851, %v838, 0.0
        %862 = vadd.xlane.f32.xlu0 %v861
        %v863 = vpop.xlane.xlu0 %862
        %v864 = vsel %vm851, %v839, 0.0
        %865 = vadd.xlane.f32.xlu0 %v864
        %v866 = vpop.xlane.xlu0 %865
        %v867 = vsel %vm851, %v840, 0.0
        %868 = vadd.xlane.f32.xlu0 %v867
        %v869 = vpop.xlane.xlu0 %868
        %v870 = vsel %vm851, %v841, 0.0
        %871 = vadd.xlane.f32.xlu0 %v870
        %v872 = vpop.xlane.xlu0 %871
        %v873 = vsel %vm851, %v842, 0.0
        %874 = vadd.xlane.f32.xlu0 %v873
        %v875 = vpop.xlane.xlu0 %874
        %v876 = vsel %vm851, %v843, 0.0
        %877 = vadd.xlane.f32.xlu0 %v876
        %v878 = vpop.xlane.xlu0 %877
        %v879 = vsel %vm851, %v844, 0.0
        %880 = vadd.xlane.f32.xlu0 %v879
        %v881 = vpop.xlane.xlu0 %880
        %v882 = vsel %vm851, %v845, 0.0
        %883 = vadd.xlane.f32.xlu0 %v882
        %v884 = vpop.xlane.xlu0 %883
        %v885 = vsel %vm851, %v846, 0.0
        %886 = vadd.xlane.f32.xlu0 %v885
        %v887 = vpop.xlane.xlu0 %886
        %v888 = vsel %vm851, %v847, 0.0
        %889 = vadd.xlane.f32.xlu0 %v888
        %v890 = vpop.xlane.xlu0 %889
        %v891 = vsel %vm851, %v848, 0.0
        %892 = vadd.xlane.f32.xlu0 %v891
        %v893 = vpop.xlane.xlu0 %892
        %v894 = vsel %vm851, %v849, 0.0
        %895 = vadd.xlane.f32.xlu0 %v894
        %v896 = vpop.xlane.xlu0 %895
        %v897 = vsel %vm851, %v850, 0.0
        %898 = vadd.xlane.f32.xlu0 %v897
        %v899 = vpop.xlane.xlu0 %898
        %v900 = vmul.f32 %v834, %v834
        %vm901 = vcmask 1044480
        %v902 = vsel %vm901, %v900, 0.0
        %v903 = vrot.slane %v902, 4
        %v904 = vadd.f32 %v902, %v903
        %v905 = vrot.slane %v904, 2
        %v906 = vadd.f32 %v904, %v905
        %v907 = vrot.slane %v906, 1
        %v908 = vadd.f32 %v906, %v907
        %v910 = vsel %vm851, %v818, 0
        %v913 = vsel %vm851, %v819, 0
        %v916 = vsel %vm851, %v820, 0
        %v919 = vsel %vm851, %v821, 0
        %v922 = vsel %vm851, %v822, 0
        %v925 = vsel %vm851, %v823, 0
        %v928 = vsel %vm851, %v824, 0
        %v931 = vsel %vm851, %v825, 0
        %v934 = vsel %vm851, %v826, 0
        %v937 = vsel %vm851, %v827, 0
        %v940 = vsel %vm851, %v828, 0
        %v943 = vsel %vm851, %v829, 0
        %v946 = vsel %vm851, %v830, 0
        %v949 = vsel %vm851, %v831, 0
        %v952 = vsel %vm851, %v832, 0
        %v955 = vsel %vm851, %v833, 0
        %v958 = vsel %vm901, %v834, 0
        %960 = vmatprep.subr.mxu0 0.0
        %961 = vmatpush1.msra.mxu0 %v958
        %962 = vmatprep.subr.mxu0 0.0
        %963 = vmatpush1.msra.mxu0 0.0
        %964 = vmatprep.subr.mxu0 0.0
        %965 = vmatpush1.msra.mxu0 0.0
        %966 = vmatprep.subr.mxu0 0.0
        %967 = vmatpush1.msra.mxu0 0.0
        %968 = vmatprep.subr.mxu0 0.0
        %969 = vmatpush1.msra.mxu0 0.0
        %970 = vmatprep.subr.mxu0 0.0
        %971 = vmatpush1.msra.mxu0 0.0
        %972 = vmatprep.subr.mxu0 0.0
        %973 = vmatpush1.msra.mxu0 0.0
        %974 = vmatprep.subr.mxu0 0.0
        %975 = vmatpush1.msra.mxu0 0.0
        %976 = vmatprep.subr.mxu0 0.0
        %977 = vmatpush1.msra.mxu0 0.0
        %978 = vmatprep.subr.mxu0 0.0
        %979 = vmatpush1.msra.mxu0 0.0
        %980 = vmatprep.subr.mxu0 0.0
        %981 = vmatpush1.msra.mxu0 0.0
        %982 = vmatprep.subr.mxu0 0.0
        %983 = vmatpush1.msra.mxu0 0.0
        %984 = vmatprep.subr.mxu0 0.0
        %985 = vmatpush1.msra.mxu0 0.0
        %986 = vmatprep.subr.mxu0 0.0
        %987 = vmatpush1.msra.mxu0 0.0
        %988 = vmatprep.subr.mxu0 0.0
        %989 = vmatpush1.msra.mxu0 0.0
        %990 = vmatprep.subr.mxu0 0.0
        %991 = vmatpush1.msra.mxu0 0.0
        %992 = vmatprep.subr.mxu0 0.0
        %993 = vmatpush1.msra.mxu0 0.0
        %994 = vmatprep.subr.mxu0 0.0
        %995 = vmatpush1.msra.mxu0 0.0
        %996 = vmatprep.subr.mxu0 0.0
        %997 = vmatpush1.msra.mxu0 0.0
        %998 = vmatprep.subr.mxu0 0.0
        %999 = vmatpush1.msra.mxu0 0.0
        %1000 = vmatprep.subr.mxu0 0.0
        %1001 = vmatpush1.msra.mxu0 0.0
        %1002 = vmatprep.subr.mxu0 0.0
        %1003 = vmatpush1.msra.mxu0 0.0
        %1004 = vmatprep.subr.mxu0 0.0
        %1005 = vmatpush1.msra.mxu0 0.0
        %1006 = vmatprep.subr.mxu0 0.0
        %1007 = vmatpush1.msra.mxu0 0.0
        %1008 = vmatprep.subr.mxu0 0.0
        %1009 = vmatpush1.msra.mxu0 0.0
        %1010 = vmatprep.subr.mxu0 0.0
        %1011 = vmatpush1.msra.mxu0 0.0
        %1012 = vmatprep.subr.mxu0 0.0
        %1013 = vmatpush1.msra.mxu0 0.0
        %1014 = vmatprep.subr.mxu0 0.0
        %1015 = vmatpush1.msra.mxu0 0.0
        %1016 = vmatprep.subr.mxu0 0.0
        %1017 = vmatpush1.msra.mxu0 0.0
        %1018 = vmatprep.subr.mxu0 0.0
        %1019 = vmatpush1.msra.mxu0 0.0
        %1020 = vmatprep.subr.mxu0 0.0
        %1021 = vmatpush1.msra.mxu0 0.0
        %1022 = vmatprep.subr.mxu0 0.0
        %1023 = vmatpush1.msra.mxu0 0.0
        %1024 = vmatprep.mubr.f32.mxu0 0.0
        %1025 = vmatmul.mubr.f32.gmra.mrb[0].mxu0 %v910
        %v1026 = vpop.f32.mrb[0].mxu0
        %v1027 = vadd.f32 0.0, %v1026
        %v1028 = vpop.f32.mrb[0].mxu0
        %1029 = vmatprep.mubr.f32.mxu0 0.0
        %1030 = vmatmul.mubr.f32.gmra.mrb[0].mxu0 %v913
        %v1031 = vpop.f32.mrb[0].mxu0
        %v1032 = vadd.f32 0.0, %v1031
        %v1033 = vpop.f32.mrb[0].mxu0
        %1034 = vmatprep.mubr.f32.mxu0 0.0
        %1035 = vmatmul.mubr.f32.gmra.mrb[0].mxu0 %v916
        %v1036 = vpop.f32.mrb[0].mxu0
        %v1037 = vadd.f32 0.0, %v1036
        %v1038 = vpop.f32.mrb[0].mxu0
        %1039 = vmatprep.mubr.f32.mxu0 0.0
        %1040 = vmatmul.mubr.f32.gmra.mrb[0].mxu0 %v919
        %v1041 = vpop.f32.mrb[0].mxu0
        %v1042 = vadd.f32 0.0, %v1041
        %v1043 = vpop.f32.mrb[0].mxu0
        %1044 = vmatprep.mubr.f32.mxu0 0.0
        %1045 = vmatmul.mubr.f32.gmra.mrb[0].mxu0 %v922
        %v1046 = vpop.f32.mrb[0].mxu0
        %v1047 = vadd.f32 0.0, %v1046
        %v1048 = vpop.f32.mrb[0].mxu0
        %1049 = vmatprep.mubr.f32.mxu0 0.0
        %1050 = vmatmul.mubr.f32.gmra.mrb[0].mxu0 %v925
        %v1051 = vpop.f32.mrb[0].mxu0
        %v1052 = vadd.f32 0.0, %v1051
        %v1053 = vpop.f32.mrb[0].mxu0
        %1054 = vmatprep.mubr.f32.mxu0 0.0
        %1055 = vmatmul.mubr.f32.gmra.mrb[0].mxu0 %v928
        %v1056 = vpop.f32.mrb[0].mxu0
        %v1057 = vadd.f32 0.0, %v1056
        %v1058 = vpop.f32.mrb[0].mxu0
        %1059 = vmatprep.mubr.f32.mxu0 0.0
        %1060 = vmatmul.mubr.f32.gmra.mrb[0].mxu0 %v931
        %v1061 = vpop.f32.mrb[0].mxu0
        %v1062 = vadd.f32 0.0, %v1061
        %v1063 = vpop.f32.mrb[0].mxu0
        %1064 = vmatprep.mubr.f32.mxu0 0.0
        %1065 = vmatmul.mubr.f32.gmra.mrb[0].mxu0 %v934
        %v1066 = vpop.f32.mrb[0].mxu0
        %v1067 = vadd.f32 0.0, %v1066
        %v1068 = vpop.f32.mrb[0].mxu0
        %1069 = vmatprep.mubr.f32.mxu0 0.0
        %1070 = vmatmul.mubr.f32.gmra.mrb[0].mxu0 %v937
        %v1071 = vpop.f32.mrb[0].mxu0
        %v1072 = vadd.f32 0.0, %v1071
        %v1073 = vpop.f32.mrb[0].mxu0
        %1074 = vmatprep.mubr.f32.mxu0 0.0
        %1075 = vmatmul.mubr.f32.gmra.mrb[0].mxu0 %v940
        %v1076 = vpop.f32.mrb[0].mxu0
        %v1077 = vadd.f32 0.0, %v1076
        %v1078 = vpop.f32.mrb[0].mxu0
        %1079 = vmatprep.mubr.f32.mxu0 0.0
        %1080 = vmatmul.mubr.f32.gmra.mrb[0].mxu0 %v943
        %v1081 = vpop.f32.mrb[0].mxu0
        %v1082 = vadd.f32 0.0, %v1081
        %v1083 = vpop.f32.mrb[0].mxu0
        %1084 = vmatprep.mubr.f32.mxu0 0.0
        %1085 = vmatmul.mubr.f32.gmra.mrb[0].mxu0 %v946
        %v1086 = vpop.f32.mrb[0].mxu0
        %v1087 = vadd.f32 0.0, %v1086
        %v1088 = vpop.f32.mrb[0].mxu0
        %1089 = vmatprep.mubr.f32.mxu0 0.0
        %1090 = vmatmul.mubr.f32.gmra.mrb[0].mxu0 %v949
        %v1091 = vpop.f32.mrb[0].mxu0
        %v1092 = vadd.f32 0.0, %v1091
        %v1093 = vpop.f32.mrb[0].mxu0
        %1094 = vmatprep.mubr.f32.mxu0 0.0
        %1095 = vmatmul.mubr.f32.gmra.mrb[0].mxu0 %v952
        %v1096 = vpop.f32.mrb[0].mxu0
        %v1097 = vadd.f32 0.0, %v1096
        %v1098 = vpop.f32.mrb[0].mxu0
        %1099 = vmatprep.mubr.f32.mxu0 0.0
        %1100 = vmatmul.mubr.f32.gmra.mrb[0].mxu0 %v955
        %v1101 = vpop.f32.mrb[0].mxu0
        %v1102 = vadd.f32 0.0, %v1101
        %v1103 = vpop.f32.mrb[0].mxu0
        %1104 = vdwg.mxu0
        %v1105 = vadd.f32 %v854, %v908
        %v1106 = vadd.f32 %v857, %v908
        %v1107 = vadd.f32 %v860, %v908
        %v1108 = vadd.f32 %v863, %v908
        %v1109 = vadd.f32 %v866, %v908
        %v1110 = vadd.f32 %v869, %v908
        %v1111 = vadd.f32 %v872, %v908
        %v1112 = vadd.f32 %v875, %v908
        %v1113 = vadd.f32 %v878, %v908
        %v1114 = vadd.f32 %v881, %v908
        %v1115 = vadd.f32 %v884, %v908
        %v1116 = vadd.f32 %v887, %v908
        %v1117 = vadd.f32 %v890, %v908
        %v1118 = vadd.f32 %v893, %v908
        %v1119 = vadd.f32 %v896, %v908
        %v1120 = vadd.f32 %v899, %v908
        %v1121 = vmul.f32 %v1027, 2.0
        %v1122 = vmul.f32 %v1032, 2.0
        %v1123 = vmul.f32 %v1037, 2.0
        %v1124 = vmul.f32 %v1042, 2.0
        %v1125 = vmul.f32 %v1047, 2.0
        %v1126 = vmul.f32 %v1052, 2.0
        %v1127 = vmul.f32 %v1057, 2.0
        %v1128 = vmul.f32 %v1062, 2.0
        %v1129 = vmul.f32 %v1067, 2.0
        %v1130 = vmul.f32 %v1072, 2.0
        %v1131 = vmul.f32 %v1077, 2.0
        %v1132 = vmul.f32 %v1082, 2.0
        %v1133 = vmul.f32 %v1087, 2.0
        %v1134 = vmul.f32 %v1092, 2.0
        %v1135 = vmul.f32 %v1097, 2.0
        %v1136 = vmul.f32 %v1102, 2.0
        %v1137 = vsub.f32 %v1105, %v1121
        %v1138 = vsub.f32 %v1106, %v1122
        %v1139 = vsub.f32 %v1107, %v1123
        %v1140 = vsub.f32 %v1108, %v1124
        %v1141 = vsub.f32 %v1109, %v1125
        %v1142 = vsub.f32 %v1110, %v1126
        %v1143 = vsub.f32 %v1111, %v1127
        %v1144 = vsub.f32 %v1112, %v1128
        %v1145 = vsub.f32 %v1113, %v1129
        %v1146 = vsub.f32 %v1114, %v1130
        %v1147 = vsub.f32 %v1115, %v1131
        %v1148 = vsub.f32 %v1116, %v1132
        %v1149 = vsub.f32 %v1117, %v1133
        %v1150 = vsub.f32 %v1118, %v1134
        %v1151 = vsub.f32 %v1119, %v1135
        %v1152 = vsub.f32 %v1120, %v1136
        %v1153 = vmax.f32 %v1137, 0.0
        %v1154 = vmax.f32 %v1138, 0.0
        %v1155 = vmax.f32 %v1139, 0.0
        %v1156 = vmax.f32 %v1140, 0.0
        %v1157 = vmax.f32 %v1141, 0.0
        %v1158 = vmax.f32 %v1142, 0.0
        %v1159 = vmax.f32 %v1143, 0.0
        %v1160 = vmax.f32 %v1144, 0.0
        %v1161 = vmax.f32 %v1145, 0.0
        %v1162 = vmax.f32 %v1146, 0.0
        %v1163 = vmax.f32 %v1147, 0.0
        %v1164 = vmax.f32 %v1148, 0.0
        %v1165 = vmax.f32 %v1149, 0.0
        %v1166 = vmax.f32 %v1150, 0.0
        %v1167 = vmax.f32 %v1151, 0.0
        %v1168 = vmax.f32 %v1152, 0.0
        %v1169 = vsub.f32 0.0, %v1153
        %v1170 = vsub.f32 0.0, %v1154
        %v1171 = vsub.f32 0.0, %v1155
        %v1172 = vsub.f32 0.0, %v1156
        %v1173 = vsub.f32 0.0, %v1157
        %v1174 = vsub.f32 0.0, %v1158
        %v1175 = vsub.f32 0.0, %v1159
        %v1176 = vsub.f32 0.0, %v1160
        %v1177 = vsub.f32 0.0, %v1161
        %v1178 = vsub.f32 0.0, %v1162
        %v1179 = vsub.f32 0.0, %v1163
        %v1180 = vsub.f32 0.0, %v1164
        %v1181 = vsub.f32 0.0, %v1165
        %v1182 = vsub.f32 0.0, %v1166
        %v1183 = vsub.f32 0.0, %v1167
        %v1184 = vsub.f32 0.0, %v1168
        %v1185 = vmul.f32 %v1169, 1.442695
        %v1186 = vpow.pop %v1185
        %v1187 = vmul.f32 %v1170, 1.442695
        %v1188 = vpow.pop %v1187
        %v1189 = vmul.f32 %v1171, 1.442695
        %v1190 = vpow.pop %v1189
        %v1191 = vmul.f32 %v1172, 1.442695
        %v1192 = vpow.pop %v1191
        %v1193 = vmul.f32 %v1173, 1.442695
        %v1194 = vpow.pop %v1193
        %v1195 = vmul.f32 %v1174, 1.442695
        %v1196 = vpow.pop %v1195
        %v1197 = vmul.f32 %v1175, 1.442695
        %v1198 = vpow.pop %v1197
        %v1199 = vmul.f32 %v1176, 1.442695
        %v1200 = vpow.pop %v1199
        %v1201 = vmul.f32 %v1177, 1.442695
        %v1202 = vpow.pop %v1201
        %v1203 = vmul.f32 %v1178, 1.442695
        %v1204 = vpow.pop %v1203
        %v1205 = vmul.f32 %v1179, 1.442695
        %v1206 = vpow.pop %v1205
        %v1207 = vmul.f32 %v1180, 1.442695
        %v1208 = vpow.pop %v1207
        %v1209 = vmul.f32 %v1181, 1.442695
        %v1210 = vpow.pop %v1209
        %v1211 = vmul.f32 %v1182, 1.442695
        %v1212 = vpow.pop %v1211
        %v1213 = vmul.f32 %v1183, 1.442695
        %v1214 = vpow.pop %v1213
        %v1215 = vmul.f32 %v1184, 1.442695
        %v1216 = vpow.pop %v1215
        %v1217 = vlaneseq
        %v1218 = vshrl.u32 %v1217, 7
        %v1219 = vadd.s32 %v1218, 8
        %v1220 = vadd.s32 %v1218, 16
        %v1221 = vadd.s32 %v1218, 24
        %v1222 = vadd.s32 %v1218, 32
        %v1223 = vadd.s32 %v1218, 40
        %v1224 = vadd.s32 %v1218, 48
        %v1225 = vadd.s32 %v1218, 56
        %v1226 = vadd.s32 %v1218, 64
        %v1227 = vadd.s32 %v1218, 72
        %v1228 = vadd.s32 %v1218, 80
        %v1229 = vadd.s32 %v1218, 88
        %v1230 = vadd.s32 %v1218, 96
        %v1231 = vadd.s32 %v1218, 104
        %v1232 = vadd.s32 %v1218, 112
        %v1233 = vadd.s32 %v1218, 120
        %v1234 = vlaneseq
        %v1235 = vand.u32 %v1234, 127
        %vm1236 = vcmp.lt.s32.totalorder %v1218, 64
        %vm1237 = vcmp.lt.s32.totalorder %v1219, 64
        %vm1238 = vcmp.lt.s32.totalorder %v1220, 64
        %vm1239 = vcmp.lt.s32.totalorder %v1221, 64
        %vm1240 = vcmp.lt.s32.totalorder %v1222, 64
        %vm1241 = vcmp.lt.s32.totalorder %v1223, 64
        %vm1242 = vcmp.lt.s32.totalorder %v1224, 64
        %vm1243 = vcmp.lt.s32.totalorder %v1225, 64
        %vm1244 = vcmp.lt.s32.totalorder %v1226, 64
        %vm1245 = vcmp.lt.s32.totalorder %v1227, 64
        %vm1246 = vcmp.lt.s32.totalorder %v1228, 64
        %vm1247 = vcmp.lt.s32.totalorder %v1229, 64
        %vm1248 = vcmp.lt.s32.totalorder %v1230, 64
        %vm1249 = vcmp.lt.s32.totalorder %v1231, 64
        %vm1250 = vcmp.lt.s32.totalorder %v1232, 64
        %vm1251 = vcmp.lt.s32.totalorder %v1233, 64
        %vm1252 = vcmp.lt.s32.totalorder %v1235, 32
        %vm1253 = vmand %vm1236, %vm1252
        %vm1254 = vmand %vm1237, %vm1252
        %vm1255 = vmand %vm1238, %vm1252
        %vm1256 = vmand %vm1239, %vm1252
        %vm1257 = vmand %vm1240, %vm1252
        %vm1258 = vmand %vm1241, %vm1252
        %vm1259 = vmand %vm1242, %vm1252
        %vm1260 = vmand %vm1243, %vm1252
        %vm1261 = vmand %vm1244, %vm1252
        %vm1262 = vmand %vm1245, %vm1252
        %vm1263 = vmand %vm1246, %vm1252
        %vm1264 = vmand %vm1247, %vm1252
        %vm1265 = vmand %vm1248, %vm1252
        %vm1266 = vmand %vm1249, %vm1252
        %vm1267 = vmand %vm1250, %vm1252
        %vm1268 = vmand %vm1251, %vm1252
        %v1269 = vsel %vm1253, %v1186, 0.0
        %v1270 = vsel %vm1254, %v1188, 0.0
        %v1271 = vsel %vm1255, %v1190, 0.0
        %v1272 = vsel %vm1256, %v1192, 0.0
        %v1273 = vsel %vm1257, %v1194, 0.0
        %v1274 = vsel %vm1258, %v1196, 0.0
        %v1275 = vsel %vm1259, %v1198, 0.0
        %v1276 = vsel %vm1260, %v1200, 0.0
        %v1277 = vsel %vm1261, %v1202, 0.0
        %v1278 = vsel %vm1262, %v1204, 0.0
        %v1279 = vsel %vm1263, %v1206, 0.0
        %v1280 = vsel %vm1264, %v1208, 0.0
        %v1281 = vsel %vm1265, %v1210, 0.0
        %v1282 = vsel %vm1266, %v1212, 0.0
        %v1283 = vsel %vm1267, %v1214, 0.0
        %v1284 = vsel %vm1268, %v1216, 0.0
        %s1285 = sld [smem:[#allocation9]]
        %v1286 = vmul.f32 %v1269, %v1269
        %v1287 = vmul.f32 %v1270, %v1270
        %v1288 = vmul.f32 %v1271, %v1271
        %v1289 = vmul.f32 %v1272, %v1272
        %v1290 = vmul.f32 %v1273, %v1273
        %v1291 = vmul.f32 %v1274, %v1274
        %v1292 = vmul.f32 %v1275, %v1275
        %v1293 = vmul.f32 %v1276, %v1276
        %v1294 = vmul.f32 %v1277, %v1277
        %v1295 = vmul.f32 %v1278, %v1278
        %v1296 = vmul.f32 %v1279, %v1279
        %v1297 = vmul.f32 %v1280, %v1280
        %v1298 = vmul.f32 %v1281, %v1281
        %v1299 = vmul.f32 %v1282, %v1282
        %v1300 = vmul.f32 %v1283, %v1283
        %v1301 = vmul.f32 %v1284, %v1284
        %v1302 = vadd.f32 %v1286, %v1287
        %v1303 = vadd.f32 %v1302, %v1288
        %v1304 = vadd.f32 %v1303, %v1289
        %v1305 = vadd.f32 %v1304, %v1290
        %v1306 = vadd.f32 %v1305, %v1291
        %v1307 = vadd.f32 %v1306, %v1292
        %v1308 = vadd.f32 %v1307, %v1293
        %v1309 = vadd.f32 %v1308, %v1294
        %v1310 = vadd.f32 %v1309, %v1295
        %v1311 = vadd.f32 %v1310, %v1296
        %v1312 = vadd.f32 %v1311, %v1297
        %v1313 = vadd.f32 %v1312, %v1298
        %v1314 = vadd.f32 %v1313, %v1299
        %v1315 = vadd.f32 %v1314, %v1300
        %v1316 = vadd.f32 %v1315, %v1301
        %1317 = vadd.xlane.f32.xlu0 %v1316
        %v1318 = vpop.xlane.xlu0 %1317
        %v1319 = vrot.slane %v1318, 4
        %v1320 = vadd.f32 %v1318, %v1319
        %v1321 = vrot.slane %v1320, 2
        %v1322 = vadd.f32 %v1320, %v1321
        %v1323 = vrot.slane %v1322, 1
        %v1324 = vadd.f32 %v1322, %v1323
        %s1325 = vtos %v1324
        %s1326 = smul.f32 %s1325, 0.0065
        %v1327 = vmul.f32 %v802, %v802
        %v1328 = vmul.f32 %v803, %v803
        %v1329 = vmul.f32 %v804, %v804
        %v1330 = vmul.f32 %v805, %v805
        %v1331 = vmul.f32 %v806, %v806
        %v1332 = vmul.f32 %v807, %v807
        %v1333 = vmul.f32 %v808, %v808
        %v1334 = vmul.f32 %v809, %v809
        %v1335 = vmul.f32 %v810, %v810
        %v1336 = vmul.f32 %v811, %v811
        %v1337 = vmul.f32 %v812, %v812
        %v1338 = vmul.f32 %v813, %v813
        %v1339 = vmul.f32 %v814, %v814
        %v1340 = vmul.f32 %v815, %v815
        %v1341 = vmul.f32 %v816, %v816
        %v1342 = vmul.f32 %v817, %v817
        %v1343 = vadd.f32 %v1327, %v1328
        %v1344 = vadd.f32 %v1343, %v1329
        %v1345 = vadd.f32 %v1344, %v1330
        %v1346 = vadd.f32 %v1345, %v1331
        %v1347 = vadd.f32 %v1346, %v1332
        %v1348 = vadd.f32 %v1347, %v1333
        %v1349 = vadd.f32 %v1348, %v1334
        %v1350 = vadd.f32 %v1349, %v1335
        %v1351 = vadd.f32 %v1350, %v1336
        %v1352 = vadd.f32 %v1351, %v1337
        %v1353 = vadd.f32 %v1352, %v1338
        %v1354 = vadd.f32 %v1353, %v1339
        %v1355 = vadd.f32 %v1354, %v1340
        %v1356 = vadd.f32 %v1355, %v1341
        %v1357 = vadd.f32 %v1356, %v1342
        %1358 = vadd.xlane.f32.xlu0 %v1357
        %v1359 = vpop.xlane.xlu0 %1358
        %v1360 = vrot.slane %v1359, 4
        %v1361 = vadd.f32 %v1359, %v1360
        %v1362 = vrot.slane %v1361, 2
        %v1363 = vadd.f32 %v1361, %v1362
        %v1364 = vrot.slane %v1363, 1
        %v1365 = vadd.f32 %v1363, %v1364
        %s1366 = vtos %v1365
        %s1367 = smul.f32 %s1366, 30.0
        %s1368 = sadd.f32 %s1326, %s1367
        %s1369 = sadd.f32 %s1285, %s1368
        %1370 = sst [smem:[%s49]] %s1369
        %v1371 = vmul.f32 %v802, %v1269
        %v1372 = vmul.f32 %v803, %v1270
        %v1373 = vmul.f32 %v804, %v1271
        %v1374 = vmul.f32 %v805, %v1272
        %v1375 = vmul.f32 %v806, %v1273
        %v1376 = vmul.f32 %v807, %v1274
        %v1377 = vmul.f32 %v808, %v1275
        %v1378 = vmul.f32 %v809, %v1276
        %v1379 = vmul.f32 %v810, %v1277
        %v1380 = vmul.f32 %v811, %v1278
        %v1381 = vmul.f32 %v812, %v1279
        %v1382 = vmul.f32 %v813, %v1280
        %v1383 = vmul.f32 %v814, %v1281
        %v1384 = vmul.f32 %v815, %v1282
        %v1385 = vmul.f32 %v816, %v1283
        %v1386 = vmul.f32 %v817, %v1284
        %v1387 = vpack.c.bf16 %v1372, %v1371
        %v1388 = vpack.c.bf16 %v1374, %v1373
        %v1389 = vpack.c.bf16 %v1376, %v1375
        %v1390 = vpack.c.bf16 %v1378, %v1377
        %v1391 = vpack.c.bf16 %v1380, %v1379
        %v1392 = vpack.c.bf16 %v1382, %v1381
        %v1393 = vpack.c.bf16 %v1384, %v1383
        %v1394 = vpack.c.bf16 %v1386, %v1385
        %1395 = vst [vmem:[#allocation3] sm:$0xff] %v1387
        %1396 = vst [vmem:[#allocation3 + $0x8] sm:$0xff] %v1388
        %1397 = vst [vmem:[#allocation3 + $0x10] sm:$0xff] %v1389
        %1398 = vst [vmem:[#allocation3 + $0x18] sm:$0xff] %v1390
        %1399 = vst [vmem:[#allocation3 + $0x20] sm:$0xff] %v1391
        %1400 = vst [vmem:[#allocation3 + $0x28] sm:$0xff] %v1392
        %1401 = vst [vmem:[#allocation3 + $0x30] sm:$0xff] %v1393
        %1402 = vst [vmem:[#allocation3 + $0x38] sm:$0xff] %v1394
    $region37: #{tpu_custom_call.1} parent=1 // pred_fallthru
      _
    %v1403 = vld [vmem:[#allocation4] sm:$0xf]
    %v1404 = vld [vmem:[#allocation2] sm:$0xff]
    %v1405 = vld [vmem:[#allocation2 + $0x8] sm:$0xff]
    %v1406 = vld [vmem:[#allocation2 + $0x10] sm:$0xff]
    %v1407 = vld [vmem:[#allocation2 + $0x18] sm:$0xff]
    %v1408 = vld [vmem:[#allocation2 + $0x20] sm:$0xff]
    %v1409 = vld [vmem:[#allocation2 + $0x28] sm:$0xff]
    %v1410 = vld [vmem:[#allocation2 + $0x30] sm:$0xff]
    %v1411 = vld [vmem:[#allocation2 + $0x38] sm:$0xff]
    %v1412 = vld [vmem:[%s4] sm:$0x1]
    %v1414 = vlaneseq
    %v1415 = vshrl.u32 %v1414, 7
    %v1416 = vsub.s32 0, %v1415
    %v1417 = vrot.slane %v1412, %v1416
    %1419 = vmatprep.subr.bf16.mxu0 0
    %1420 = vmatpush1.bf16.msra.mxu0 %v1404
    %1421 = vmatprep.subr.bf16.mxu0 0
    %1422 = vmatpush1.bf16.msra.mxu0 %v1405
    %1423 = vmatprep.subr.bf16.mxu0 0
    %1424 = vmatpush1.bf16.msra.mxu0 %v1406
    %1425 = vmatprep.subr.bf16.mxu0 0
    %1426 = vmatpush1.bf16.msra.mxu0 %v1407
    %1427 = vmatprep.subr.bf16.mxu0 0
    %1428 = vmatpush1.bf16.msra.mxu0 %v1408
    %1429 = vmatprep.subr.bf16.mxu0 0
    %1430 = vmatpush1.bf16.msra.mxu0 %v1409
    %1431 = vmatprep.subr.bf16.mxu0 0
    %1432 = vmatpush1.bf16.msra.mxu0 %v1410
    %1433 = vmatprep.subr.bf16.mxu0 0
    %1434 = vmatpush1.bf16.msra.mxu0 %v1411
    %1435 = vmatprep.subr.bf16.mxu0 0
    %1436 = vmatpush1.bf16.msra.mxu0 0
    %1437 = vmatprep.subr.bf16.mxu0 0
    %1438 = vmatpush1.bf16.msra.mxu0 0
    %1439 = vmatprep.subr.bf16.mxu0 0
    %1440 = vmatpush1.bf16.msra.mxu0 0
    %1441 = vmatprep.subr.bf16.mxu0 0
    %1442 = vmatpush1.bf16.msra.mxu0 0
    %1443 = vmatprep.subr.bf16.mxu0 0
    %1444 = vmatpush1.bf16.msra.mxu0 0
    %1445 = vmatprep.subr.bf16.mxu0 0
    %1446 = vmatpush1.bf16.msra.mxu0 0
    %1447 = vmatprep.subr.bf16.mxu0 0
    %1448 = vmatpush1.bf16.msra.mxu0 0
    %1449 = vmatprep.subr.bf16.mxu0 0
    %1450 = vmatpush1.bf16.msra.mxu0 0
    %1451 = vmatprep.mubr.bf16.mxu0 0
    %1452 = vmatmul.mubr.bf16.gmra.mrb[0].mxu0 %v1403
    %v1453 = vpop.f32.mrb[0].mxu0
    %v1454 = vadd.f32 %v1417, %v1453
    %v1455 = vpop.f32.mrb[0].mxu0
    %v1456 = vpop.f32.mrb[0].mxu0
    %v1457 = vpop.f32.mrb[0].mxu0
    %1458 = vdwg.mxu0
    %v1459 = vmul.f32 %v1454, 0.5
    %v1460 = vtanh.pop %v1459
    %v1461 = vadd.f32 %v1460, 1.0
    %v1462 = vmul.f32 %v1461, 0.5
    %v1463 = vpack.c.bf16 %v1462, %v1462
    %v1464 = vld [vmem:[#allocation3] sm:$0xff]
    %v1465 = vld [vmem:[#allocation3 + $0x8] sm:$0xff]
    %v1466 = vld [vmem:[#allocation3 + $0x10] sm:$0xff]
    %v1467 = vld [vmem:[#allocation3 + $0x18] sm:$0xff]
    %v1468 = vld [vmem:[#allocation3 + $0x20] sm:$0xff]
    %v1469 = vld [vmem:[#allocation3 + $0x28] sm:$0xff]
    %v1470 = vld [vmem:[#allocation3 + $0x30] sm:$0xff]
    %v1471 = vld [vmem:[#allocation3 + $0x38] sm:$0xff]
    %v1472 = vld [vmem:[%s8] sm:$0x1]
    %v1474 = vlaneseq
    %v1475 = vshrl.u32 %v1474, 7
    %v1476 = vsub.s32 0, %v1475
    %v1477 = vrot.slane %v1472, %v1476
    %1479 = vmatprep.subr.bf16.mxu0 0
    %1480 = vmatpush1.bf16.msra.mxu0 %v1464
    %1481 = vmatprep.subr.bf16.mxu0 0
    %1482 = vmatpush1.bf16.msra.mxu0 %v1465
    %1483 = vmatprep.subr.bf16.mxu0 0
    %1484 = vmatpush1.bf16.msra.mxu0 %v1466
    %1485 = vmatprep.subr.bf16.mxu0 0
    %1486 = vmatpush1.bf16.msra.mxu0 %v1467
    %1487 = vmatprep.subr.bf16.mxu0 0
    %1488 = vmatpush1.bf16.msra.mxu0 %v1468
    %1489 = vmatprep.subr.bf16.mxu0 0
    %1490 = vmatpush1.bf16.msra.mxu0 %v1469
    %1491 = vmatprep.subr.bf16.mxu0 0
    %1492 = vmatpush1.bf16.msra.mxu0 %v1470
    %1493 = vmatprep.subr.bf16.mxu0 0
    %1494 = vmatpush1.bf16.msra.mxu0 %v1471
    %1495 = vmatprep.subr.bf16.mxu0 0
    %1496 = vmatpush1.bf16.msra.mxu0 0
    %1497 = vmatprep.subr.bf16.mxu0 0
    %1498 = vmatpush1.bf16.msra.mxu0 0
    %1499 = vmatprep.subr.bf16.mxu0 0
    %1500 = vmatpush1.bf16.msra.mxu0 0
    %1501 = vmatprep.subr.bf16.mxu0 0
    %1502 = vmatpush1.bf16.msra.mxu0 0
    %1503 = vmatprep.subr.bf16.mxu0 0
    %1504 = vmatpush1.bf16.msra.mxu0 0
    %1505 = vmatprep.subr.bf16.mxu0 0
    %1506 = vmatpush1.bf16.msra.mxu0 0
    %1507 = vmatprep.subr.bf16.mxu0 0
    %1508 = vmatpush1.bf16.msra.mxu0 0
    %1509 = vmatprep.subr.bf16.mxu0 0
    %1510 = vmatpush1.bf16.msra.mxu0 0
    %1511 = vmatprep.mubr.bf16.mxu0 0
    %1512 = vmatmul.mubr.bf16.gmra.mrb[0].mxu0 %v1463
    %v1513 = vpop.f32.mrb[0].mxu0
    %v1514 = vadd.f32 %v1477, %v1513
    %v1515 = vpop.f32.mrb[0].mxu0
    %v1516 = vpop.f32.mrb[0].mxu0
    %v1517 = vpop.f32.mrb[0].mxu0
    %1518 = vdwg.mxu0
    %v1519 = vmul.f32 %v1514, 0.5
    %v1520 = vtanh.pop %v1519
    %v1521 = vadd.f32 %v1520, 1.0
    %v1522 = vmul.f32 %v1521, 0.5
    %1523 = vst [vmem:[#allocation8] sm:$0xff] %v1522
    // Predicated region
    $region110: #{tpu_custom_call.1} parent=1 // pred_check
      _
    $region111: #{tpu_custom_call.1} parent=1 // pred_check_branch
      %1525 = sbr.rel (0) target = $region113
    $region112: #{tpu_custom_call.1} parent=1 // pred_region
      %s1527 = ssub.s32 128, 128
      %1528 = vsyncadd [#allocation6], %s1527
      %s1530 = sshll.u32 [#allocation8], 4
      %s1531 = int_to_ptr.vmem [resolvable:$true] %s1530
      %1533 = dma.vmem_to_hbm [thread:$0]  %s1531, 128, %s9, [#allocation6]
    $region113: #{tpu_custom_call.1} parent=1 // pred_fallthru
      _
    // Predicated region
    $region114: #{tpu_custom_call.1} parent=1 // pred_check
      _
    $region115: #{tpu_custom_call.1} parent=1 // pred_check_branch
      %1535 = sbr.rel (0) target = $region117
    $region116: #{tpu_custom_call.1} parent=1 // pred_region
      %s1537 = ssub.s32 16, 16
      %1538 = vsyncadd [#allocation7], %s1537
      %1541 = dma.smem_to_hbm [#allocation9], 16, %s10, [#allocation7]
    $region117: #{tpu_custom_call.1} parent=1 // pred_fallthru
      _
    // Predicated region
    $region118: #{tpu_custom_call.1} parent=1 // pred_check
      _
    $region119: #{tpu_custom_call.1} parent=1 // pred_check_branch
      %1543 = sbr.rel (0) target = $region121
    $region120: #{tpu_custom_call.1} parent=1 // pred_region
      %1544 = dma.done [#allocation6], 128
    $region121: #{tpu_custom_call.1} parent=1 // pred_fallthru
      _
    // Predicated region
    $region122: #{tpu_custom_call.1} parent=1 // pred_check
      _
    $region123: #{tpu_custom_call.1} parent=1 // pred_check_branch
      %1546 = sbr.rel (0) target = $region125
    $region124: #{tpu_custom_call.1} parent=1 // pred_region
      %1547 = dma.done [#allocation7], 16
    $region125: #{tpu_custom_call.1} parent=1 // pred_fallthru
      _
    %1548 = sfence
    %1549 = vsyncpa [#allocation5], 1
    %1550 = vsyncpa [#allocation6], 1
    %1551 = vsyncpa [#allocation7], 1

</llo_original>
